<compile_context>
chip_gen: v5e
topology: v5e:2x2
jax: 0.10.0
libtpu: 0.0.40
codegen_flags: <defaults>
</compile_context>

<pallas_src>
import functools

import jax
import jax.numpy as jnp
from jax.experimental import pallas as pl
from jax.experimental.pallas import tpu as pltpu

LANE = 128          # pad feature dims to multiples of the 128-wide lane axis
SUBLANE = 8         # batch/block row granularity
MXU_DTYPE = jnp.bfloat16   # MXU-native operand dtype on v5e/v6e/v7x


def _round_up(n, m):
    return (n + m - 1) // m * m


def _device_kind():
    try:
        return jax.devices()[0].device_kind.lower()
    except Exception:
        return ""


def _vmem_budget_bytes():
    """Per-generation ceiling on the scoped VMEM we are willing to request."""
    kind = _device_kind()
    if "v7" in kind:
        return 48 << 20          # v7x: 64 MiB physical per TC -> leave headroom
    return 96 << 20              # v5e / v6e: 128 MiB physical VMEM


def _default_batch_tile():
    kind = _device_kind()
    if "v7" in kind:
        return 256               # smaller VMEM per TC
    return 512                   # v5e / v6e


def _fused_mlp_kernel(x_ref, *refs, activations):
    """Chained (x @ W_i + b_i) -> activation_i, entirely inside VMEM/vregs.

    x_ref : (tile, In_p) bf16 activation tile (streamed / double-buffered)
    refs  : (w0, b0, w1, b1, ..., o_ref); w_i bf16 resident, b_i f32 resident.
    """
    o_ref = refs[-1]
    wb = refs[:-1]
    x = x_ref[...]                                   # bf16 MXU feed
    y = None
    for i, act in enumerate(activations):
        w = wb[2 * i][...]                           # bf16, VMEM-resident (pre-cast)
        b = wb[2 * i + 1][...]                       # f32 (1, Out), broadcasts over rows
        y = jnp.dot(x, w, preferred_element_type=jnp.float32) + b
        if act == "relu":
            y = jnp.maximum(y, 0.0)                  # f32 on the VPU
        elif act == "tanh":
            y = jnp.tanh(y)                          # f32 on the EUP
        x = y.astype(MXU_DTYPE)                      # bf16 feed for the next MXU pass
    o_ref[...] = y.astype(o_ref.dtype)


def _group_vmem_bytes(tile, p_sizes, weight_bufs):
    """Estimated VMEM need for one fused group (padded sizes p_sizes)."""
    w_bytes = sum(p_sizes[i] * p_sizes[i + 1] for i in range(len(p_sizes) - 1)) * 2
    b_bytes = sum(p_sizes[1:]) * 4
    x_bytes = 2 * tile * p_sizes[0] * 2       # bf16 input tile, double-buffered
    o_bytes = 2 * tile * p_sizes[-1] * 4      # f32 output tile, double-buffered
    mid = 2 * tile * max(p_sizes) * 4         # headroom for in-kernel temporaries
    return weight_bufs * (w_bytes + b_bytes) + x_bytes + o_bytes + mid


def _run_group(xp, wps, bps, activations, p_sizes, tile, budget):
    """Run one fused group.  xp: (rows, p_in) bf16 -> (rows, p_out) f32."""
    rows = xp.shape[0]
    grid = (pl.cdiv(rows, tile),)
    kernel = functools.partial(_fused_mlp_kernel, activations=tuple(activations))

    n = len(activations)
    flops = 2 * rows * sum(p_sizes[i] * p_sizes[i + 1] for i in range(n))
    bytes_accessed = (
        rows * p_sizes[0] * 2 + rows * p_sizes[-1] * 4
        + sum(p_sizes[i] * p_sizes[i + 1] * 2 + p_sizes[i + 1] * 4 for i in range(n)))

    def build(single_buffer_weights):
        in_specs = [pl.BlockSpec((tile, p_sizes[0]), lambda i: (i, 0))]
        for li in range(n):
            fip, fop = p_sizes[li], p_sizes[li + 1]
            if single_buffer_weights:
                # Constant index_map -> no prefetch needed; single buffer halves
                # the resident-weight VMEM cost (important on v7x).
                in_specs += [
                    pl.BlockSpec((fip, fop), lambda i: (0, 0),
                                 pipeline_mode=pl.Buffered(1)),
                    pl.BlockSpec((1, fop), lambda i: (0, 0),
                                 pipeline_mode=pl.Buffered(1)),
                ]
            else:
                in_specs += [
                    pl.BlockSpec((fip, fop), lambda i: (0, 0)),
                    pl.BlockSpec((1, fop), lambda i: (0, 0)),
                ]
        nbuf = 1 if single_buffer_weights else 2
        vmem_need = _group_vmem_bytes(tile, p_sizes, nbuf)
        vmem_limit = int(min(budget, max(32 << 20, 2 * vmem_need + (8 << 20))))
        return pl.pallas_call(
            kernel,
            out_shape=jax.ShapeDtypeStruct((rows, p_sizes[-1]), jnp.float32),
            grid=grid,
            in_specs=in_specs,
            out_specs=pl.BlockSpec((tile, p_sizes[-1]), lambda i: (i, 0)),
            compiler_params=pltpu.CompilerParams(
                # Batch tiles are independent -> pipelined; shardable across
                # both TensorCores on v7x.
                dimension_semantics=("parallel",),
                vmem_limit_bytes=vmem_limit,
            ),
            cost_estimate=pl.CostEstimate(
                flops=int(flops),
                transcendentals=int(rows * p_sizes[-1]),
                bytes_accessed=int(bytes_accessed),
            ),
        )

    flat = [xp]
    for w, b in zip(wps, bps):
        flat += [w, b]

    # Prefer single-buffered resident weights; fall back to the default
    # double-buffered specs if this Pallas version rejects Buffered(1).
    try:
        return build(True)(*flat)
    except Exception:
        return build(False)(*flat)


def fully_connected_forward(x, params, *, batch_tile=None):
    """Forward pass of the MLP as (usually) ONE fused Pallas kernel.

    x      : (B, input_size) float32
    params : list of (w, b), w: (in, out), b: (1, out) or (out,)
    Hidden layers use ReLU, the final layer uses Tanh (matches the module).
    """
    B, in_size = x.shape
    n_layers = len(params)
    out_size = params[-1][0].shape[1]

    sizes = [in_size] + [w.shape[1] for (w, _) in params]
    padded = [_round_up(s, LANE) for s in sizes]

    if batch_tile is None:
        batch_tile = _default_batch_tile()

    # Batch: round rows up to the sublane granularity only (tiny or no copy)
    # and use a cdiv grid with a partial last block -- no full batch pad/slice.
    B8 = _round_up(max(B, 1), SUBLANE)
    tile = _round_up(min(batch_tile, B8), SUBLANE)
    budget = _vmem_budget_bytes()

    # Input: cast to bf16 (halves its DMA bytes); zero-pad feature/row dims
    # only when actually needed.
    if B8 != B or padded[0] != in_size:
        xp = jnp.zeros((B8, padded[0]), MXU_DTYPE).at[:B, :in_size].set(
            x.astype(MXU_DTYPE))
    else:
        xp = x.astype(MXU_DTYPE)

    # Weights: zero-pad to lane-dense shapes and pre-cast to bf16 in the
    # wrapper so the kernel never re-casts resident weights per grid step.
    # Biases stay f32 (bias-add / activations run in f32).
    wps, bps = [], []
    for li, (w, b) in enumerate(params):
        fi, fo = w.shape
        fip, fop = padded[li], padded[li + 1]
        wp = jnp.zeros((fip, fop), MXU_DTYPE).at[:fi, :fo].set(
            jnp.asarray(w).astype(MXU_DTYPE))
        bp = jnp.zeros((1, fop), jnp.float32).at[:, :fo].set(
            jnp.asarray(b, jnp.float32).reshape(1, -1))
        wps.append(wp)
        bps.append(bp)

    activations = ["relu"] * (n_layers - 1) + ["tanh"]

    # Greedily group consecutive layers so that each group's single-buffered
    # weights + pipelined activation/output tiles fit the VMEM budget.
    # (Normally one group == whole network.)
    groups = []
    start = 0
    while start < n_layers:
        end = start + 1
        while end < n_layers and _group_vmem_bytes(
                tile, padded[start:end + 2], 1) <= budget:
            end += 1
        # TODO(synk): if a single layer alone exceeds the budget, tile its
        # output-feature dim with an inner pltpu.emit_pipeline instead.
        groups.append((start, end))
        start = end

    out = None
    for gi, (s, e) in enumerate(groups):
        out = _run_group(xp, wps[s:e], bps[s:e], activations[s:e],
                         padded[s:e + 1], tile, budget)
        if gi + 1 < len(groups):
            xp = out.astype(MXU_DTYPE)

    if B8 != B or padded[-1] != out_size:
        out = out[:B, :out_size]
    return out


def init_params(key, input_size, layers_sizes, output_size):
    """Parameter init matching the PyTorch module's layer shapes.

    sizes = [input_size] + layers_sizes (+ ReLU each), final Linear -> Tanh.
    Weights are stored as (in, out) (transposed vs. torch's (out, in)).
    """
    sizes = [input_size] + list(layers_sizes) + [output_size]
    params = []
    for i in range(len(sizes) - 1):
        fan_in, fan_out = sizes[i], sizes[i + 1]
        key, kw, kb = jax.random.split(key, 3)
        bound = 1.0 / jnp.sqrt(fan_in)
        w = jax.random.uniform(kw, (fan_in, fan_out), jnp.float32, -bound, bound)
        b = jax.random.uniform(kb, (1, fan_out), jnp.float32, -bound, bound)
        params.append((w, b))
    return params


if __name__ == "__main__":
    # FullyConnectedNetwork(input_size=32, layers_sizes=[64, 48], output_size=16)
    batch = 200
    input_size = 32
    layers_sizes = [64, 48]
    output_size = 16

    key = jax.random.PRNGKey(0)
    key, kx = jax.random.split(key)
    x = jax.random.normal(kx, (batch, input_size), jnp.float32)

    params = init_params(key, input_size, layers_sizes, output_size)

    out = fully_connected_forward(x, params)
    out = jax.block_until_ready(out)
    assert out.shape == (batch, output_size)

    # Reference matching the kernel's precision: bf16 MXU operands, f32
    # accumulation, f32 bias-add / ReLU / tanh.
    ref = x.astype(jnp.bfloat16)
    for i, (w, b) in enumerate(params):
        ref = jnp.dot(ref, w.astype(jnp.bfloat16),
                      preferred_element_type=jnp.float32) + b
        if i < len(params) - 1:
            ref = jnp.maximum(ref, 0.0).astype(jnp.bfloat16)
        else:
            ref = jnp.tanh(ref)
    assert jnp.allclose(out, ref, atol=5e-3, rtol=5e-3), float(
        jnp.max(jnp.abs(out - ref)))

    # Sanity check against the pure-f32 module semantics (loose tol: bf16 feed).
    ref32 = x
    for i, (w, b) in enumerate(params):
        ref32 = ref32 @ w + jnp.asarray(b, jnp.float32).reshape(1, -1)
        ref32 = jnp.maximum(ref32, 0.0) if i < len(params) - 1 else jnp.tanh(ref32)
    assert jnp.allclose(out, ref32, atol=3e-2, rtol=3e-2)

    print("KERNEL_OK")
</pallas_src>

<mosaic_0001>
module attributes {stable_mosaic.version = 11 : i64} {
  func.func @_fused_mlp_kernel(%arg0: i32, %arg1: memref<200x128xbf16, #tpu.memory_space<vmem>>, %arg2: memref<128x128xbf16, #tpu.memory_space<vmem>>, %arg3: memref<1x128xf32, #tpu.memory_space<vmem>>, %arg4: memref<128x128xbf16, #tpu.memory_space<vmem>>, %arg5: memref<1x128xf32, #tpu.memory_space<vmem>>, %arg6: memref<128x128xbf16, #tpu.memory_space<vmem>>, %arg7: memref<1x128xf32, #tpu.memory_space<vmem>>, %arg8: memref<200x128xf32, #tpu.memory_space<vmem>>) attributes {dimension_semantics = [#tpu.dimension_semantics<parallel>], iteration_bounds = array<i64: 1>, scalar_prefetch = 0 : i64, scratch_operands = 0 : i64, tpu.core_type = #tpu.core_type<tc>, window_params = [{transform_indices = @transform_0, window_bounds = array<i64: 200, 128>}, {pipeline_mode = #tpu.pipeline_mode<synchronous>, transform_indices = @transform_1, window_bounds = array<i64: 128, 128>}, {pipeline_mode = #tpu.pipeline_mode<synchronous>, transform_indices = @transform_2, window_bounds = array<i64: 1, 128>}, {pipeline_mode = #tpu.pipeline_mode<synchronous>, transform_indices = @transform_3, window_bounds = array<i64: 128, 128>}, {pipeline_mode = #tpu.pipeline_mode<synchronous>, transform_indices = @transform_4, window_bounds = array<i64: 1, 128>}, {pipeline_mode = #tpu.pipeline_mode<synchronous>, transform_indices = @transform_5, window_bounds = array<i64: 128, 128>}, {pipeline_mode = #tpu.pipeline_mode<synchronous>, transform_indices = @transform_6, window_bounds = array<i64: 1, 128>}, {transform_indices = @transform_7, window_bounds = array<i64: 200, 128>}]} {
    %c0 = arith.constant 0 : index
    %c0_0 = arith.constant 0 : index
    %0 = vector.load %arg1[%c0, %c0_0] : memref<200x128xbf16, #tpu.memory_space<vmem>>, vector<200x128xbf16>
    %c0_1 = arith.constant 0 : index
    %c0_2 = arith.constant 0 : index
    %1 = vector.load %arg2[%c0_1, %c0_2] : memref<128x128xbf16, #tpu.memory_space<vmem>>, vector<128x128xbf16>
    %c0_3 = arith.constant 0 : index
    %c0_4 = arith.constant 0 : index
    %2 = vector.load %arg3[%c0_3, %c0_4] : memref<1x128xf32, #tpu.memory_space<vmem>>, vector<1x128xf32>
    %cst = arith.constant dense<0.000000e+00> : vector<200x128xf32>
    %3 = tpu.matmul %0, %1, %cst {dimension_numbers = #tpu.dot_dimension_numbers<[1], [0], [0], [1], [0, 0, 1, 1], [], []>} : vector<200x128xbf16>, vector<128x128xbf16>, vector<200x128xf32> -> vector<200x128xf32>
    %4 = vector.broadcast %2 : vector<1x128xf32> to vector<200x128xf32>
    %5 = arith.addf %3, %4 : vector<200x128xf32>
    %cst_5 = arith.constant 0.000000e+00 : f32
    %6 = vector.broadcast %cst_5 : f32 to vector<200x128xf32>
    %7 = arith.maximumf %5, %6 : vector<200x128xf32>
    %8 = arith.truncf %7 : vector<200x128xf32> to vector<200x128xbf16>
    %c0_6 = arith.constant 0 : index
    %c0_7 = arith.constant 0 : index
    %9 = vector.load %arg4[%c0_6, %c0_7] : memref<128x128xbf16, #tpu.memory_space<vmem>>, vector<128x128xbf16>
    %c0_8 = arith.constant 0 : index
    %c0_9 = arith.constant 0 : index
    %10 = vector.load %arg5[%c0_8, %c0_9] : memref<1x128xf32, #tpu.memory_space<vmem>>, vector<1x128xf32>
    %cst_10 = arith.constant dense<0.000000e+00> : vector<200x128xf32>
    %11 = tpu.matmul %8, %9, %cst_10 {dimension_numbers = #tpu.dot_dimension_numbers<[1], [0], [0], [1], [0, 0, 1, 1], [], []>} : vector<200x128xbf16>, vector<128x128xbf16>, vector<200x128xf32> -> vector<200x128xf32>
    %12 = vector.broadcast %10 : vector<1x128xf32> to vector<200x128xf32>
    %13 = arith.addf %11, %12 : vector<200x128xf32>
    %cst_11 = arith.constant 0.000000e+00 : f32
    %14 = vector.broadcast %cst_11 : f32 to vector<200x128xf32>
    %15 = arith.maximumf %13, %14 : vector<200x128xf32>
    %16 = arith.truncf %15 : vector<200x128xf32> to vector<200x128xbf16>
    %c0_12 = arith.constant 0 : index
    %c0_13 = arith.constant 0 : index
    %17 = vector.load %arg6[%c0_12, %c0_13] : memref<128x128xbf16, #tpu.memory_space<vmem>>, vector<128x128xbf16>
    %c0_14 = arith.constant 0 : index
    %c0_15 = arith.constant 0 : index
    %18 = vector.load %arg7[%c0_14, %c0_15] : memref<1x128xf32, #tpu.memory_space<vmem>>, vector<1x128xf32>
    %cst_16 = arith.constant dense<0.000000e+00> : vector<200x128xf32>
    %19 = tpu.matmul %16, %17, %cst_16 {dimension_numbers = #tpu.dot_dimension_numbers<[1], [0], [0], [1], [0, 0, 1, 1], [], []>} : vector<200x128xbf16>, vector<128x128xbf16>, vector<200x128xf32> -> vector<200x128xf32>
    %20 = vector.broadcast %18 : vector<1x128xf32> to vector<200x128xf32>
    %21 = arith.addf %19, %20 : vector<200x128xf32>
    %22 = math.tanh %21 : vector<200x128xf32>
    %c0_17 = arith.constant 0 : index
    %c0_18 = arith.constant 0 : index
    %23 = vector.load %arg8[%c0_17, %c0_18] : memref<200x128xf32, #tpu.memory_space<vmem>>, vector<200x128xf32>
    tpu.vector_store %arg8[%c0_17, %c0_18], %22 {strides = array<i32>} : memref<200x128xf32, #tpu.memory_space<vmem>>, vector<200x128xf32>,
    return
  }
  func.func @transform_0(%arg0: i32) -> (i32, i32) {
    %c0_i32 = arith.constant 0 : i32
    %c0_i32_0 = arith.constant 0 : i32
    return %arg0, %c0_i32 : i32, i32
  }
  func.func @transform_1(%arg0: i32) -> (i32, i32) {
    %c0_i32 = arith.constant 0 : i32
    %c0_i32_0 = arith.constant 0 : i32
    %c0_i32_1 = arith.constant 0 : i32
    return %c0_i32, %c0_i32_0 : i32, i32
  }
  func.func @transform_2(%arg0: i32) -> (i32, i32) {
    %c0_i32 = arith.constant 0 : i32
    %c0_i32_0 = arith.constant 0 : i32
    %c0_i32_1 = arith.constant 0 : i32
    return %c0_i32, %c0_i32_0 : i32, i32
  }
  func.func @transform_3(%arg0: i32) -> (i32, i32) {
    %c0_i32 = arith.constant 0 : i32
    %c0_i32_0 = arith.constant 0 : i32
    %c0_i32_1 = arith.constant 0 : i32
    return %c0_i32, %c0_i32_0 : i32, i32
  }
  func.func @transform_4(%arg0: i32) -> (i32, i32) {
    %c0_i32 = arith.constant 0 : i32
    %c0_i32_0 = arith.constant 0 : i32
    %c0_i32_1 = arith.constant 0 : i32
    return %c0_i32, %c0_i32_0 : i32, i32
  }
  func.func @transform_5(%arg0: i32) -> (i32, i32) {
    %c0_i32 = arith.constant 0 : i32
    %c0_i32_0 = arith.constant 0 : i32
    %c0_i32_1 = arith.constant 0 : i32
    return %c0_i32, %c0_i32_0 : i32, i32
  }
  func.func @transform_6(%arg0: i32) -> (i32, i32) {
    %c0_i32 = arith.constant 0 : i32
    %c0_i32_0 = arith.constant 0 : i32
    %c0_i32_1 = arith.constant 0 : i32
    return %c0_i32, %c0_i32_0 : i32, i32
  }
  func.func @transform_7(%arg0: i32) -> (i32, i32) {
    %c0_i32 = arith.constant 0 : i32
    %c0_i32_0 = arith.constant 0 : i32
    return %arg0, %c0_i32 : i32, i32
  }
}

module attributes {stable_mosaic.version = 11 : i64} {
  func.func @_fused_mlp_kernel(%arg0: i32, %arg1: memref<200x128xbf16, #tpu.memory_space<vmem>>, %arg2: memref<128x128xbf16, #tpu.memory_space<vmem>>, %arg3: memref<1x128xf32, #tpu.memory_space<vmem>>, %arg4: memref<128x128xbf16, #tpu.memory_space<vmem>>, %arg5: memref<1x128xf32, #tpu.memory_space<vmem>>, %arg6: memref<128x128xbf16, #tpu.memory_space<vmem>>, %arg7: memref<1x128xf32, #tpu.memory_space<vmem>>, %arg8: memref<200x128xf32, #tpu.memory_space<vmem>>) attributes {dimension_semantics = [#tpu.dimension_semantics<parallel>], iteration_bounds = array<i64: 1>, scalar_prefetch = 0 : i64, scratch_operands = 0 : i64, tpu.core_type = #tpu.core_type<tc>, window_params = [{transform_indices = @transform_0, window_bounds = array<i64: 200, 128>}, {pipeline_mode = #tpu.pipeline_mode<synchronous>, transform_indices = @transform_1, window_bounds = array<i64: 128, 128>}, {pipeline_mode = #tpu.pipeline_mode<synchronous>, transform_indices = @transform_2, window_bounds = array<i64: 1, 128>}, {pipeline_mode = #tpu.pipeline_mode<synchronous>, transform_indices = @transform_3, window_bounds = array<i64: 128, 128>}, {pipeline_mode = #tpu.pipeline_mode<synchronous>, transform_indices = @transform_4, window_bounds = array<i64: 1, 128>}, {pipeline_mode = #tpu.pipeline_mode<synchronous>, transform_indices = @transform_5, window_bounds = array<i64: 128, 128>}, {pipeline_mode = #tpu.pipeline_mode<synchronous>, transform_indices = @transform_6, window_bounds = array<i64: 1, 128>}, {transform_indices = @transform_7, window_bounds = array<i64: 200, 128>}]} {
    %c0 = arith.constant 0 : index
    %c0_0 = arith.constant 0 : index
    %0 = vector.load %arg1[%c0, %c0_0] : memref<200x128xbf16, #tpu.memory_space<vmem>>, vector<200x128xbf16>
    %c0_1 = arith.constant 0 : index
    %c0_2 = arith.constant 0 : index
    %1 = vector.load %arg2[%c0_1, %c0_2] : memref<128x128xbf16, #tpu.memory_space<vmem>>, vector<128x128xbf16>
    %c0_3 = arith.constant 0 : index
    %c0_4 = arith.constant 0 : index
    %2 = vector.load %arg3[%c0_3, %c0_4] : memref<1x128xf32, #tpu.memory_space<vmem>>, vector<1x128xf32>
    %cst = arith.constant dense<0.000000e+00> : vector<200x128xf32>
    %3 = tpu.matmul %0, %1, %cst {dimension_numbers = #tpu.dot_dimension_numbers<[1], [0], [0], [1], [0, 0, 1, 1], [], []>} : vector<200x128xbf16>, vector<128x128xbf16>, vector<200x128xf32> -> vector<200x128xf32>
    %4 = vector.broadcast %2 : vector<1x128xf32> to vector<200x128xf32>
    %5 = arith.addf %3, %4 : vector<200x128xf32>
    %cst_5 = arith.constant 0.000000e+00 : f32
    %6 = vector.broadcast %cst_5 : f32 to vector<200x128xf32>
    %7 = arith.maximumf %5, %6 : vector<200x128xf32>
    %8 = arith.truncf %7 : vector<200x128xf32> to vector<200x128xbf16>
    %c0_6 = arith.constant 0 : index
    %c0_7 = arith.constant 0 : index
    %9 = vector.load %arg4[%c0_6, %c0_7] : memref<128x128xbf16, #tpu.memory_space<vmem>>, vector<128x128xbf16>
    %c0_8 = arith.constant 0 : index
    %c0_9 = arith.constant 0 : index
    %10 = vector.load %arg5[%c0_8, %c0_9] : memref<1x128xf32, #tpu.memory_space<vmem>>, vector<1x128xf32>
    %cst_10 = arith.constant dense<0.000000e+00> : vector<200x128xf32>
    %11 = tpu.matmul %8, %9, %cst_10 {dimension_numbers = #tpu.dot_dimension_numbers<[1], [0], [0], [1], [0, 0, 1, 1], [], []>} : vector<200x128xbf16>, vector<128x128xbf16>, vector<200x128xf32> -> vector<200x128xf32>
    %12 = vector.broadcast %10 : vector<1x128xf32> to vector<200x128xf32>
    %13 = arith.addf %11, %12 : vector<200x128xf32>
    %cst_11 = arith.constant 0.000000e+00 : f32
    %14 = vector.broadcast %cst_11 : f32 to vector<200x128xf32>
    %15 = arith.maximumf %13, %14 : vector<200x128xf32>
    %16 = arith.truncf %15 : vector<200x128xf32> to vector<200x128xbf16>
    %c0_12 = arith.constant 0 : index
    %c0_13 = arith.constant 0 : index
    %17 = vector.load %arg6[%c0_12, %c0_13] : memref<128x128xbf16, #tpu.memory_space<vmem>>, vector<128x128xbf16>
    %c0_14 = arith.constant 0 : index
    %c0_15 = arith.constant 0 : index
    %18 = vector.load %arg7[%c0_14, %c0_15] : memref<1x128xf32, #tpu.memory_space<vmem>>, vector<1x128xf32>
    %cst_16 = arith.constant dense<0.000000e+00> : vector<200x128xf32>
    %19 = tpu.matmul %16, %17, %cst_16 {dimension_numbers = #tpu.dot_dimension_numbers<[1], [0], [0], [1], [0, 0, 1, 1], [], []>} : vector<200x128xbf16>, vector<128x128xbf16>, vector<200x128xf32> -> vector<200x128xf32>
    %20 = vector.broadcast %18 : vector<1x128xf32> to vector<200x128xf32>
    %21 = arith.addf %19, %20 : vector<200x128xf32>
    %22 = math.tanh %21 : vector<200x128xf32>
    %c0_17 = arith.constant 0 : index
    %c0_18 = arith.constant 0 : index
    %23 = vector.load %arg8[%c0_17, %c0_18] : memref<200x128xf32, #tpu.memory_space<vmem>>, vector<200x128xf32>
    tpu.vector_store %arg8[%c0_17, %c0_18], %22 {strides = array<i32>} : memref<200x128xf32, #tpu.memory_space<vmem>>, vector<200x128xf32>,
    return
  }
  func.func @transform_0(%arg0: i32) -> (i32, i32) {
    %c0_i32 = arith.constant 0 : i32
    %c0_i32_0 = arith.constant 0 : i32
    return %arg0, %c0_i32 : i32, i32
  }
  func.func @transform_1(%arg0: i32) -> (i32, i32) {
    %c0_i32 = arith.constant 0 : i32
    %c0_i32_0 = arith.constant 0 : i32
    %c0_i32_1 = arith.constant 0 : i32
    return %c0_i32, %c0_i32_0 : i32, i32
  }
  func.func @transform_2(%arg0: i32) -> (i32, i32) {
    %c0_i32 = arith.constant 0 : i32
    %c0_i32_0 = arith.constant 0 : i32
    %c0_i32_1 = arith.constant 0 : i32
    return %c0_i32, %c0_i32_0 : i32, i32
  }
  func.func @transform_3(%arg0: i32) -> (i32, i32) {
    %c0_i32 = arith.constant 0 : i32
    %c0_i32_0 = arith.constant 0 : i32
    %c0_i32_1 = arith.constant 0 : i32
    return %c0_i32, %c0_i32_0 : i32, i32
  }
  func.func @transform_4(%arg0: i32) -> (i32, i32) {
    %c0_i32 = arith.constant 0 : i32
    %c0_i32_0 = arith.constant 0 : i32
    %c0_i32_1 = arith.constant 0 : i32
    return %c0_i32, %c0_i32_0 : i32, i32
  }
  func.func @transform_5(%arg0: i32) -> (i32, i32) {
    %c0_i32 = arith.constant 0 : i32
    %c0_i32_0 = arith.constant 0 : i32
    %c0_i32_1 = arith.constant 0 : i32
    return %c0_i32, %c0_i32_0 : i32, i32
  }
  func.func @transform_6(%arg0: i32) -> (i32, i32) {
    %c0_i32 = arith.constant 0 : i32
    %c0_i32_0 = arith.constant 0 : i32
    %c0_i32_1 = arith.constant 0 : i32
    return %c0_i32, %c0_i32_0 : i32, i32
  }
  func.func @transform_7(%arg0: i32) -> (i32, i32) {
    %c0_i32 = arith.constant 0 : i32
    %c0_i32_0 = arith.constant 0 : i32
    return %arg0, %c0_i32 : i32, i32
  }
}

</mosaic_0001>

<llo_original>
// kernel: tpu_custom_call.1
$region0: #{tpu_custom_call.1}
  #allocation0 [shape = 'u32[]', space=smem, size = 0x4, offset = 0x4, fixed_abs, tag = 'smem constant byte address 0x4 - core index']
  #allocation1 [shape = 'u32[72,128]{1,0:T(1,128)}', space=vmem, size = 0x9000, scoped, tag = 'internal scratch']
  %s0 = inlined_call_operand.hbm [shape: bf16[200,128], index: 0, kind: input, shape index: {}]
  %s1 = inlined_call_operand.hbm [shape: bf16[128,128], index: 1, kind: input, shape index: {}]
  %s2 = inlined_call_operand.vmem [shape: f32[1,128], index: 2, kind: input, shape index: {}]
  %s3 = inlined_call_operand.hbm [shape: bf16[128,128], index: 3, kind: input, shape index: {}]
  %s4 = inlined_call_operand.vmem [shape: f32[1,128], index: 4, kind: input, shape index: {}]
  %s5 = inlined_call_operand.hbm [shape: bf16[128,128], index: 5, kind: input, shape index: {}]
  %s6 = inlined_call_operand.vmem [shape: f32[1,128], index: 6, kind: input, shape index: {}]
  %s7 = inlined_call_operand.hbm [shape: f32[200,128], index: 7, kind: output, shape index: {}]
  %s8 = sld [smem:[#allocation0]]
  $region54: #{tpu_custom_call.1} parent=0
    _
  %s10 = ssub.s32 1, %s8
  %s11 = scalar_select 0, %s10, %s8
  $region1: #{tpu_custom_call.1} parent=0
    #allocation2 [shape = 'u8[51200]{0}', space=vmem, size = 0xc800, scoped, tag = 'input window, operand 0, single buffered']
    #allocation3 [shape = 's32[1]{0}', space=sflag, size = 0x4, scoped, tag = 'scoped memory for tpu_custom_call.1']
    #allocation4 [shape = 's32[1]{0}', space=sflag, size = 0x4, scoped, tag = 'scoped memory for tpu_custom_call.1']
    #allocation5 [shape = 'u8[32768]{0}', space=vmem, size = 0x8000, scoped, tag = 'input window, operand 1, single buffered']
    #allocation6 [shape = 's32[1]{0}', space=sflag, size = 0x4, scoped, tag = 'scoped memory for tpu_custom_call.1']
    #allocation7 [shape = 'u8[32768]{0}', space=vmem, size = 0x8000, scoped, tag = 'input window, operand 3, single buffered']
    #allocation8 [shape = 'u8[32768]{0}', space=vmem, size = 0x8000, scoped, tag = 'input window, operand 5, single buffered']
    #allocation9 [shape = 's32[1]{0}', space=sflag, size = 0x4, scoped, tag = 'scoped memory for tpu_custom_call.1']
    #allocation10 [shape = 'u8[102400]{0}', space=vmem, size = 0x19000, scoped, tag = 'output window, operand 0, single buffered']
    %12 = vsyncpa [#allocation3], 0
    %13 = vsyncpa [#allocation6], 0
    %14 = vsyncpa [#allocation9], 0
    %15 = vsyncpa [#allocation4], 0
    // Predicated region
    $region2: #{tpu_custom_call.1} parent=1 // pred_check
      _
    $region3: #{tpu_custom_call.1} parent=1 // pred_check_branch
      %17 = sbr.rel (0) target = $region5
    $region4: #{tpu_custom_call.1} parent=1 // pred_region
      %19 = vsyncadd [#allocation3], 0
      %s20 = sshll.u32 %s0, 4
      %s21 = int_to_ptr.hbm [resolvable:$true] %s20
      %s22 = sshll.u32 [#allocation2], 4
      %s23 = int_to_ptr.vmem [resolvable:$true] %s22
      %28 = dma.hbm_to_vmem [thread:$0]  %s21, 1600, %s23, [#allocation3], 64, 64, 4
    $region5: #{tpu_custom_call.1} parent=1 // pred_fallthru
      _
    // Predicated region
    $region6: #{tpu_custom_call.1} parent=1 // pred_check
      _
    $region7: #{tpu_custom_call.1} parent=1 // pred_check_branch
      %30 = sbr.rel (0) target = $region9
    $region8: #{tpu_custom_call.1} parent=1 // pred_region
      %32 = vsyncadd [#allocation6], 0
      %s33 = sshll.u32 %s1, 4
      %s34 = int_to_ptr.hbm [resolvable:$true] %s33
      %s35 = sshll.u32 [#allocation5], 4
      %s36 = int_to_ptr.vmem [resolvable:$true] %s35
      %41 = dma.hbm_to_vmem [thread:$0]  %s34, 1024, %s36, [#allocation6], 64, 64, 4
    $region9: #{tpu_custom_call.1} parent=1 // pred_fallthru
      _
    // Predicated region
    $region10: #{tpu_custom_call.1} parent=1 // pred_check
      _
    $region11: #{tpu_custom_call.1} parent=1 // pred_check_branch
      %43 = sbr.rel (0) target = $region13
    $region12: #{tpu_custom_call.1} parent=1 // pred_region
      _
    $region13: #{tpu_custom_call.1} parent=1 // pred_fallthru
      _
    // Predicated region
    $region14: #{tpu_custom_call.1} parent=1 // pred_check
      _
    $region15: #{tpu_custom_call.1} parent=1 // pred_check_branch
      %45 = sbr.rel (0) target = $region17
    $region16: #{tpu_custom_call.1} parent=1 // pred_region
      %47 = vsyncadd [#allocation6], 0
      %s48 = sshll.u32 %s3, 4
      %s49 = int_to_ptr.hbm [resolvable:$true] %s48
      %s50 = sshll.u32 [#allocation7], 4
      %s51 = int_to_ptr.vmem [resolvable:$true] %s50
      %56 = dma.hbm_to_vmem [thread:$0]  %s49, 1024, %s51, [#allocation6], 64, 64, 4
    $region17: #{tpu_custom_call.1} parent=1 // pred_fallthru
      _
    // Predicated region
    $region18: #{tpu_custom_call.1} parent=1 // pred_check
      _
    $region19: #{tpu_custom_call.1} parent=1 // pred_check_branch
      %58 = sbr.rel (0) target = $region21
    $region20: #{tpu_custom_call.1} parent=1 // pred_region
      _
    $region21: #{tpu_custom_call.1} parent=1 // pred_fallthru
      _
    // Predicated region
    $region22: #{tpu_custom_call.1} parent=1 // pred_check
      _
    $region23: #{tpu_custom_call.1} parent=1 // pred_check_branch
      %60 = sbr.rel (0) target = $region25
    $region24: #{tpu_custom_call.1} parent=1 // pred_region
      %62 = vsyncadd [#allocation9], 0
      %s63 = sshll.u32 %s5, 4
      %s64 = int_to_ptr.hbm [resolvable:$true] %s63
      %s65 = sshll.u32 [#allocation8], 4
      %s66 = int_to_ptr.vmem [resolvable:$true] %s65
      %71 = dma.hbm_to_vmem [thread:$0]  %s64, 1024, %s66, [#allocation9], 64, 64, 4
    $region25: #{tpu_custom_call.1} parent=1 // pred_fallthru
      _
    // Predicated region
    $region26: #{tpu_custom_call.1} parent=1 // pred_check
      _
    $region27: #{tpu_custom_call.1} parent=1 // pred_check_branch
      %73 = sbr.rel (0) target = $region29
    $region28: #{tpu_custom_call.1} parent=1 // pred_region
      _
    $region29: #{tpu_custom_call.1} parent=1 // pred_fallthru
      _
    // Predicated region
    $region30: #{tpu_custom_call.1} parent=1 // pred_check
      _
    $region31: #{tpu_custom_call.1} parent=1 // pred_check_branch
      %75 = sbr.rel (0) target = $region33
    $region32: #{tpu_custom_call.1} parent=1 // pred_region
      %77 = dma.done [#allocation3], 1600
    $region33: #{tpu_custom_call.1} parent=1 // pred_fallthru
      _
    // Predicated region
    $region34: #{tpu_custom_call.1} parent=1 // pred_check
      _
    $region35: #{tpu_custom_call.1} parent=1 // pred_check_branch
      %79 = sbr.rel (0) target = $region37
    $region36: #{tpu_custom_call.1} parent=1 // pred_region
      %81 = dma.done [#allocation6], 1024
    $region37: #{tpu_custom_call.1} parent=1 // pred_fallthru
      _
    // Predicated region
    $region38: #{tpu_custom_call.1} parent=1 // pred_check
      _
    $region39: #{tpu_custom_call.1} parent=1 // pred_check_branch
      %83 = sbr.rel (0) target = $region41
    $region40: #{tpu_custom_call.1} parent=1 // pred_region
      %85 = dma.done [#allocation6], 1024
    $region41: #{tpu_custom_call.1} parent=1 // pred_fallthru
      _
    // Predicated region
    $region42: #{tpu_custom_call.1} parent=1 // pred_check
      _
    $region43: #{tpu_custom_call.1} parent=1 // pred_check_branch
      %87 = sbr.rel (0) target = $region45
    $region44: #{tpu_custom_call.1} parent=1 // pred_region
      %89 = dma.done [#allocation9], 1024
    $region45: #{tpu_custom_call.1} parent=1 // pred_fallthru
      _
    %v90 = vld [vmem:[#allocation2] sm:$0xf]
    %v91 = vld [vmem:[#allocation2 + $0x4] sm:$0xf]
    %v92 = vld [vmem:[#allocation2 + $0x8] sm:$0xf]
    %v93 = vld [vmem:[#allocation2 + $0xc] sm:$0xf]
    %v94 = vld [vmem:[#allocation2 + $0x10] sm:$0xf]
    %v95 = vld [vmem:[#allocation2 + $0x14] sm:$0xf]
    %v96 = vld [vmem:[#allocation2 + $0x18] sm:$0xf]
    %v97 = vld [vmem:[#allocation2 + $0x1c] sm:$0xf]
    %v98 = vld [vmem:[#allocation2 + $0x20] sm:$0xf]
    %v99 = vld [vmem:[#allocation2 + $0x24] sm:$0xf]
    %v100 = vld [vmem:[#allocation2 + $0x28] sm:$0xf]
    %v101 = vld [vmem:[#allocation2 + $0x2c] sm:$0xf]
    %v102 = vld [vmem:[#allocation2 + $0x30] sm:$0xf]
    %v103 = vld [vmem:[#allocation2 + $0x34] sm:$0xf]
    %v104 = vld [vmem:[#allocation2 + $0x38] sm:$0xf]
    %v105 = vld [vmem:[#allocation2 + $0x3c] sm:$0xf]
    %v106 = vld [vmem:[#allocation2 + $0x40] sm:$0xf]
    %v107 = vld [vmem:[#allocation2 + $0x44] sm:$0xf]
    %v108 = vld [vmem:[#allocation2 + $0x48] sm:$0xf]
    %v109 = vld [vmem:[#allocation2 + $0x4c] sm:$0xf]
    %v110 = vld [vmem:[#allocation2 + $0x50] sm:$0xf]
    %v111 = vld [vmem:[#allocation2 + $0x54] sm:$0xf]
    %v112 = vld [vmem:[#allocation2 + $0x58] sm:$0xf]
    %v113 = vld [vmem:[#allocation2 + $0x5c] sm:$0xf]
    %v114 = vld [vmem:[#allocation2 + $0x60] sm:$0xf]
    %v115 = vld [vmem:[#allocation5] sm:$0xf]
    %v116 = vld [vmem:[#allocation5 + $0x4] sm:$0xf]
    %v117 = vld [vmem:[#allocation5 + $0x8] sm:$0xf]
    %v118 = vld [vmem:[#allocation5 + $0xc] sm:$0xf]
    %v119 = vld [vmem:[#allocation5 + $0x10] sm:$0xf]
    %v120 = vld [vmem:[#allocation5 + $0x14] sm:$0xf]
    %v121 = vld [vmem:[#allocation5 + $0x18] sm:$0xf]
    %v122 = vld [vmem:[#allocation5 + $0x1c] sm:$0xf]
    %v123 = vld [vmem:[#allocation5 + $0x20] sm:$0xf]
    %v124 = vld [vmem:[#allocation5 + $0x24] sm:$0xf]
    %v125 = vld [vmem:[#allocation5 + $0x28] sm:$0xf]
    %v126 = vld [vmem:[#allocation5 + $0x2c] sm:$0xf]
    %v127 = vld [vmem:[#allocation5 + $0x30] sm:$0xf]
    %v128 = vld [vmem:[#allocation5 + $0x34] sm:$0xf]
    %v129 = vld [vmem:[#allocation5 + $0x38] sm:$0xf]
    %v130 = vld [vmem:[#allocation5 + $0x3c] sm:$0xf]
    %v131 = vld [vmem:[%s2] sm:$0x1]
    %v133 = vperm.slane %v131, 0
    %v160 = vunpack.c.l.b16 %v90
    %v161 = vunpack.c.l.b16 %v91
    %v162 = vunpack.c.l.b16 %v92
    %v163 = vunpack.c.l.b16 %v93
    %v164 = vunpack.c.l.b16 %v94
    %v165 = vunpack.c.l.b16 %v95
    %v166 = vunpack.c.l.b16 %v96
    %v167 = vunpack.c.l.b16 %v97
    %v168 = vunpack.c.l.b16 %v98
    %v169 = vunpack.c.l.b16 %v99
    %v170 = vunpack.c.l.b16 %v100
    %v171 = vunpack.c.l.b16 %v101
    %v172 = vunpack.c.l.b16 %v102
    %v173 = vunpack.c.l.b16 %v103
    %v174 = vunpack.c.l.b16 %v104
    %v175 = vunpack.c.l.b16 %v105
    %v176 = vunpack.c.l.b16 %v106
    %v177 = vunpack.c.l.b16 %v107
    %v178 = vunpack.c.l.b16 %v108
    %v179 = vunpack.c.l.b16 %v109
    %v180 = vunpack.c.l.b16 %v110
    %v181 = vunpack.c.l.b16 %v111
    %v182 = vunpack.c.l.b16 %v112
    %v183 = vunpack.c.l.b16 %v113
    %v184 = vunpack.c.l.b16 %v114
    %v185 = vpack.c.b16 %v161, %v160
    %v186 = vpack.c.b16 %v163, %v162
    %v187 = vpack.c.b16 %v165, %v164
    %v188 = vpack.c.b16 %v167, %v166
    %v189 = vpack.c.b16 %v169, %v168
    %v190 = vpack.c.b16 %v171, %v170
    %v191 = vpack.c.b16 %v173, %v172
    %v192 = vpack.c.b16 %v175, %v174
    %v193 = vpack.c.b16 %v177, %v176
    %v194 = vpack.c.b16 %v179, %v178
    %v195 = vpack.c.b16 %v181, %v180
    %v196 = vpack.c.b16 %v183, %v182
    %v197 = vpack.c.b16 %v184, %v184
    %v227 = vunpack.c.l.b16 %v115
    %v228 = vunpack.c.l.b16 %v116
    %v229 = vunpack.c.l.b16 %v117
    %v230 = vunpack.c.l.b16 %v118
    %v231 = vunpack.c.l.b16 %v119
    %v232 = vunpack.c.l.b16 %v120
    %v233 = vunpack.c.l.b16 %v121
    %v234 = vunpack.c.l.b16 %v122
    %v235 = vunpack.c.l.b16 %v123
    %v236 = vunpack.c.l.b16 %v124
    %v237 = vunpack.c.l.b16 %v125
    %v238 = vunpack.c.l.b16 %v126
    %v239 = vunpack.c.l.b16 %v127
    %v240 = vunpack.c.l.b16 %v128
    %v241 = vunpack.c.l.b16 %v129
    %v242 = vunpack.c.l.b16 %v130
    %v243 = vpack.c.b16 %v228, %v227
    %v244 = vpack.c.b16 %v230, %v229
    %v245 = vpack.c.b16 %v232, %v231
    %v246 = vpack.c.b16 %v234, %v233
    %v247 = vpack.c.b16 %v236, %v235
    %v248 = vpack.c.b16 %v238, %v237
    %v249 = vpack.c.b16 %v240, %v239
    %v250 = vpack.c.b16 %v242, %v241
    %259 = vmatpush.bf16.msra.mxu0 %v250
    %260 = vmatpush.bf16.msra.mxu0 %v249
    %261 = vmatpush.bf16.msra.mxu0 %v248
    %262 = vmatpush.bf16.msra.mxu0 %v247
    %263 = vmatpush.bf16.msra.mxu0 %v246
    %264 = vmatpush.bf16.msra.mxu0 %v245
    %265 = vmatpush.bf16.msra.mxu0 %v244
    %266 = vmatpush.bf16.msra.mxu0 %v243
    %267 = vmatmul.bf16.gmra.mxu0 %v185
    %v268 = vpop.f32.mrf.mxu0
    %v269 = vadd.f32 %v133, %v268
    %v270 = vpop.f32.mrf.mxu0
    %v271 = vadd.f32 %v133, %v270
    %272 = vmatmul.bf16.gmra.mxu0 %v186
    %v273 = vpop.f32.mrf.mxu0
    %v274 = vadd.f32 %v133, %v273
    %v275 = vpop.f32.mrf.mxu0
    %v276 = vadd.f32 %v133, %v275
    %277 = vmatmul.bf16.gmra.mxu0 %v187
    %v278 = vpop.f32.mrf.mxu0
    %v279 = vadd.f32 %v133, %v278
    %v280 = vpop.f32.mrf.mxu0
    %v281 = vadd.f32 %v133, %v280
    %282 = vmatmul.bf16.gmra.mxu0 %v188
    %v283 = vpop.f32.mrf.mxu0
    %v284 = vadd.f32 %v133, %v283
    %v285 = vpop.f32.mrf.mxu0
    %v286 = vadd.f32 %v133, %v285
    %287 = vmatmul.bf16.gmra.mxu0 %v189
    %v288 = vpop.f32.mrf.mxu0
    %v289 = vadd.f32 %v133, %v288
    %v290 = vpop.f32.mrf.mxu0
    %v291 = vadd.f32 %v133, %v290
    %292 = vmatmul.bf16.gmra.mxu0 %v190
    %v293 = vpop.f32.mrf.mxu0
    %v294 = vadd.f32 %v133, %v293
    %v295 = vpop.f32.mrf.mxu0
    %v296 = vadd.f32 %v133, %v295
    %297 = vmatmul.bf16.gmra.mxu0 %v191
    %v298 = vpop.f32.mrf.mxu0
    %v299 = vadd.f32 %v133, %v298
    %v300 = vpop.f32.mrf.mxu0
    %v301 = vadd.f32 %v133, %v300
    %302 = vmatmul.bf16.gmra.mxu0 %v192
    %v303 = vpop.f32.mrf.mxu0
    %v304 = vadd.f32 %v133, %v303
    %v305 = vpop.f32.mrf.mxu0
    %v306 = vadd.f32 %v133, %v305
    %307 = vmatmul.bf16.gmra.mxu0 %v193
    %v308 = vpop.f32.mrf.mxu0
    %v309 = vadd.f32 %v133, %v308
    %v310 = vpop.f32.mrf.mxu0
    %v311 = vadd.f32 %v133, %v310
    %312 = vmatmul.bf16.gmra.mxu0 %v194
    %v313 = vpop.f32.mrf.mxu0
    %v314 = vadd.f32 %v133, %v313
    %v315 = vpop.f32.mrf.mxu0
    %v316 = vadd.f32 %v133, %v315
    %317 = vmatmul.bf16.gmra.mxu0 %v195
    %v318 = vpop.f32.mrf.mxu0
    %v319 = vadd.f32 %v133, %v318
    %v320 = vpop.f32.mrf.mxu0
    %v321 = vadd.f32 %v133, %v320
    %322 = vmatmul.bf16.gmra.mxu0 %v196
    %v323 = vpop.f32.mrf.mxu0
    %v324 = vadd.f32 %v133, %v323
    %v325 = vpop.f32.mrf.mxu0
    %v326 = vadd.f32 %v133, %v325
    %327 = vmatmul.bf16.gmra.mxu0 %v197
    %v328 = vpop.f32.mrf.mxu0
    %v329 = vadd.f32 %v133, %v328
    %v330 = vpop.f32.mrf.mxu0
    %331 = vdwg.mxu0
    %v332 = vmax.f32 %v269, 0.0
    %v333 = vmax.f32 %v271, 0.0
    %v334 = vmax.f32 %v274, 0.0
    %v335 = vmax.f32 %v276, 0.0
    %v336 = vmax.f32 %v279, 0.0
    %v337 = vmax.f32 %v281, 0.0
    %v338 = vmax.f32 %v284, 0.0
    %v339 = vmax.f32 %v286, 0.0
    %v340 = vmax.f32 %v289, 0.0
    %v341 = vmax.f32 %v291, 0.0
    %v342 = vmax.f32 %v294, 0.0
    %v343 = vmax.f32 %v296, 0.0
    %v344 = vmax.f32 %v299, 0.0
    %v345 = vmax.f32 %v301, 0.0
    %v346 = vmax.f32 %v304, 0.0
    %v347 = vmax.f32 %v306, 0.0
    %v348 = vmax.f32 %v309, 0.0
    %v349 = vmax.f32 %v311, 0.0
    %v350 = vmax.f32 %v314, 0.0
    %v351 = vmax.f32 %v316, 0.0
    %v352 = vmax.f32 %v319, 0.0
    %v353 = vmax.f32 %v321, 0.0
    %v354 = vmax.f32 %v324, 0.0
    %v355 = vmax.f32 %v326, 0.0
    %v356 = vmax.f32 %v329, 0.0
    %v357 = vpack.c.bf16 %v333, %v332
    %v358 = vpack.c.bf16 %v335, %v334
    %v359 = vpack.c.bf16 %v337, %v336
    %v360 = vpack.c.bf16 %v339, %v338
    %v361 = vpack.c.bf16 %v341, %v340
    %v362 = vpack.c.bf16 %v343, %v342
    %v363 = vpack.c.bf16 %v345, %v344
    %v364 = vpack.c.bf16 %v347, %v346
    %v365 = vpack.c.bf16 %v349, %v348
    %v366 = vpack.c.bf16 %v351, %v350
    %v367 = vpack.c.bf16 %v353, %v352
    %v368 = vpack.c.bf16 %v355, %v354
    %v369 = vpack.c.bf16 %v356, %v356
    %v370 = vld [vmem:[#allocation7] sm:$0xf]
    %v371 = vld [vmem:[#allocation7 + $0x4] sm:$0xf]
    %v372 = vld [vmem:[#allocation7 + $0x8] sm:$0xf]
    %v373 = vld [vmem:[#allocation7 + $0xc] sm:$0xf]
    %v374 = vld [vmem:[#allocation7 + $0x10] sm:$0xf]
    %v375 = vld [vmem:[#allocation7 + $0x14] sm:$0xf]
    %v376 = vld [vmem:[#allocation7 + $0x18] sm:$0xf]
    %v377 = vld [vmem:[#allocation7 + $0x1c] sm:$0xf]
    %v378 = vld [vmem:[#allocation7 + $0x20] sm:$0xf]
    %v379 = vld [vmem:[#allocation7 + $0x24] sm:$0xf]
    %v380 = vld [vmem:[#allocation7 + $0x28] sm:$0xf]
    %v381 = vld [vmem:[#allocation7 + $0x2c] sm:$0xf]
    %v382 = vld [vmem:[#allocation7 + $0x30] sm:$0xf]
    %v383 = vld [vmem:[#allocation7 + $0x34] sm:$0xf]
    %v384 = vld [vmem:[#allocation7 + $0x38] sm:$0xf]
    %v385 = vld [vmem:[#allocation7 + $0x3c] sm:$0xf]
    %v386 = vld [vmem:[%s4] sm:$0x1]
    %v388 = vperm.slane %v386, 0
    %v406 = vunpack.c.l.b16 %v370
    %v407 = vunpack.c.l.b16 %v371
    %v408 = vunpack.c.l.b16 %v372
    %v409 = vunpack.c.l.b16 %v373
    %v410 = vunpack.c.l.b16 %v374
    %v411 = vunpack.c.l.b16 %v375
    %v412 = vunpack.c.l.b16 %v376
    %v413 = vunpack.c.l.b16 %v377
    %v414 = vunpack.c.l.b16 %v378
    %v415 = vunpack.c.l.b16 %v379
    %v416 = vunpack.c.l.b16 %v380
    %v417 = vunpack.c.l.b16 %v381
    %v418 = vunpack.c.l.b16 %v382
    %v419 = vunpack.c.l.b16 %v383
    %v420 = vunpack.c.l.b16 %v384
    %v421 = vunpack.c.l.b16 %v385
    %v422 = vpack.c.b16 %v407, %v406
    %v423 = vpack.c.b16 %v409, %v408
    %v424 = vpack.c.b16 %v411, %v410
    %v425 = vpack.c.b16 %v413, %v412
    %v426 = vpack.c.b16 %v415, %v414
    %v427 = vpack.c.b16 %v417, %v416
    %v428 = vpack.c.b16 %v419, %v418
    %v429 = vpack.c.b16 %v421, %v420
    %438 = vmatpush.bf16.msra.mxu0 %v429
    %439 = vmatpush.bf16.msra.mxu0 %v428
    %440 = vmatpush.bf16.msra.mxu0 %v427
    %441 = vmatpush.bf16.msra.mxu0 %v426
    %442 = vmatpush.bf16.msra.mxu0 %v425
    %443 = vmatpush.bf16.msra.mxu0 %v424
    %444 = vmatpush.bf16.msra.mxu0 %v423
    %445 = vmatpush.bf16.msra.mxu0 %v422
    %446 = vmatmul.bf16.gmra.mxu0 %v357
    %v447 = vpop.f32.mrf.mxu0
    %v448 = vadd.f32 %v388, %v447
    %v449 = vpop.f32.mrf.mxu0
    %v450 = vadd.f32 %v388, %v449
    %451 = vmatmul.bf16.gmra.mxu0 %v358
    %v452 = vpop.f32.mrf.mxu0
    %v453 = vadd.f32 %v388, %v452
    %v454 = vpop.f32.mrf.mxu0
    %v455 = vadd.f32 %v388, %v454
    %456 = vmatmul.bf16.gmra.mxu0 %v359
    %v457 = vpop.f32.mrf.mxu0
    %v458 = vadd.f32 %v388, %v457
    %v459 = vpop.f32.mrf.mxu0
    %v460 = vadd.f32 %v388, %v459
    %461 = vmatmul.bf16.gmra.mxu0 %v360
    %v462 = vpop.f32.mrf.mxu0
    %v463 = vadd.f32 %v388, %v462
    %v464 = vpop.f32.mrf.mxu0
    %v465 = vadd.f32 %v388, %v464
    %466 = vmatmul.bf16.gmra.mxu0 %v361
    %v467 = vpop.f32.mrf.mxu0
    %v468 = vadd.f32 %v388, %v467
    %v469 = vpop.f32.mrf.mxu0
    %v470 = vadd.f32 %v388, %v469
    %471 = vmatmul.bf16.gmra.mxu0 %v362
    %v472 = vpop.f32.mrf.mxu0
    %v473 = vadd.f32 %v388, %v472
    %v474 = vpop.f32.mrf.mxu0
    %v475 = vadd.f32 %v388, %v474
    %476 = vmatmul.bf16.gmra.mxu0 %v363
    %v477 = vpop.f32.mrf.mxu0
    %v478 = vadd.f32 %v388, %v477
    %v479 = vpop.f32.mrf.mxu0
    %v480 = vadd.f32 %v388, %v479
    %481 = vmatmul.bf16.gmra.mxu0 %v364
    %v482 = vpop.f32.mrf.mxu0
    %v483 = vadd.f32 %v388, %v482
    %v484 = vpop.f32.mrf.mxu0
    %v485 = vadd.f32 %v388, %v484
    %486 = vmatmul.bf16.gmra.mxu0 %v365
    %v487 = vpop.f32.mrf.mxu0
    %v488 = vadd.f32 %v388, %v487
    %v489 = vpop.f32.mrf.mxu0
    %v490 = vadd.f32 %v388, %v489
    %491 = vmatmul.bf16.gmra.mxu0 %v366
    %v492 = vpop.f32.mrf.mxu0
    %v493 = vadd.f32 %v388, %v492
    %v494 = vpop.f32.mrf.mxu0
    %v495 = vadd.f32 %v388, %v494
    %496 = vmatmul.bf16.gmra.mxu0 %v367
    %v497 = vpop.f32.mrf.mxu0
    %v498 = vadd.f32 %v388, %v497
    %v499 = vpop.f32.mrf.mxu0
    %v500 = vadd.f32 %v388, %v499
    %501 = vmatmul.bf16.gmra.mxu0 %v368
    %v502 = vpop.f32.mrf.mxu0
    %v503 = vadd.f32 %v388, %v502
    %v504 = vpop.f32.mrf.mxu0
    %v505 = vadd.f32 %v388, %v504
    %506 = vmatmul.bf16.gmra.mxu0 %v369
    %v507 = vpop.f32.mrf.mxu0
    %v508 = vadd.f32 %v388, %v507
    %v509 = vpop.f32.mrf.mxu0
    %510 = vdwg.mxu0
    %v511 = vmax.f32 %v448, 0.0
    %v512 = vmax.f32 %v450, 0.0
    %v513 = vmax.f32 %v453, 0.0
    %v514 = vmax.f32 %v455, 0.0
    %v515 = vmax.f32 %v458, 0.0
    %v516 = vmax.f32 %v460, 0.0
    %v517 = vmax.f32 %v463, 0.0
    %v518 = vmax.f32 %v465, 0.0
    %v519 = vmax.f32 %v468, 0.0
    %v520 = vmax.f32 %v470, 0.0
    %v521 = vmax.f32 %v473, 0.0
    %v522 = vmax.f32 %v475, 0.0
    %v523 = vmax.f32 %v478, 0.0
    %v524 = vmax.f32 %v480, 0.0
    %v525 = vmax.f32 %v483, 0.0
    %v526 = vmax.f32 %v485, 0.0
    %v527 = vmax.f32 %v488, 0.0
    %v528 = vmax.f32 %v490, 0.0
    %v529 = vmax.f32 %v493, 0.0
    %v530 = vmax.f32 %v495, 0.0
    %v531 = vmax.f32 %v498, 0.0
    %v532 = vmax.f32 %v500, 0.0
    %v533 = vmax.f32 %v503, 0.0
    %v534 = vmax.f32 %v505, 0.0
    %v535 = vmax.f32 %v508, 0.0
    %v536 = vpack.c.bf16 %v512, %v511
    %v537 = vpack.c.bf16 %v514, %v513
    %v538 = vpack.c.bf16 %v516, %v515
    %v539 = vpack.c.bf16 %v518, %v517
    %v540 = vpack.c.bf16 %v520, %v519
    %v541 = vpack.c.bf16 %v522, %v521
    %v542 = vpack.c.bf16 %v524, %v523
    %v543 = vpack.c.bf16 %v526, %v525
    %v544 = vpack.c.bf16 %v528, %v527
    %v545 = vpack.c.bf16 %v530, %v529
    %v546 = vpack.c.bf16 %v532, %v531
    %v547 = vpack.c.bf16 %v534, %v533
    %v548 = vpack.c.bf16 %v535, %v535
    %v549 = vld [vmem:[#allocation8] sm:$0xf]
    %v550 = vld [vmem:[#allocation8 + $0x4] sm:$0xf]
    %v551 = vld [vmem:[#allocation8 + $0x8] sm:$0xf]
    %v552 = vld [vmem:[#allocation8 + $0xc] sm:$0xf]
    %v553 = vld [vmem:[#allocation8 + $0x10] sm:$0xf]
    %v554 = vld [vmem:[#allocation8 + $0x14] sm:$0xf]
    %v555 = vld [vmem:[#allocation8 + $0x18] sm:$0xf]
    %v556 = vld [vmem:[#allocation8 + $0x1c] sm:$0xf]
    %v557 = vld [vmem:[#allocation8 + $0x20] sm:$0xf]
    %v558 = vld [vmem:[#allocation8 + $0x24] sm:$0xf]
    %v559 = vld [vmem:[#allocation8 + $0x28] sm:$0xf]
    %v560 = vld [vmem:[#allocation8 + $0x2c] sm:$0xf]
    %v561 = vld [vmem:[#allocation8 + $0x30] sm:$0xf]
    %v562 = vld [vmem:[#allocation8 + $0x34] sm:$0xf]
    %v563 = vld [vmem:[#allocation8 + $0x38] sm:$0xf]
    %v564 = vld [vmem:[#allocation8 + $0x3c] sm:$0xf]
    %v565 = vld [vmem:[%s6] sm:$0x1]
    %v567 = vperm.slane %v565, 0
    %v585 = vunpack.c.l.b16 %v549
    %v586 = vunpack.c.l.b16 %v550
    %v587 = vunpack.c.l.b16 %v551
    %v588 = vunpack.c.l.b16 %v552
    %v589 = vunpack.c.l.b16 %v553
    %v590 = vunpack.c.l.b16 %v554
    %v591 = vunpack.c.l.b16 %v555
    %v592 = vunpack.c.l.b16 %v556
    %v593 = vunpack.c.l.b16 %v557
    %v594 = vunpack.c.l.b16 %v558
    %v595 = vunpack.c.l.b16 %v559
    %v596 = vunpack.c.l.b16 %v560
    %v597 = vunpack.c.l.b16 %v561
    %v598 = vunpack.c.l.b16 %v562
    %v599 = vunpack.c.l.b16 %v563
    %v600 = vunpack.c.l.b16 %v564
    %v601 = vpack.c.b16 %v586, %v585
    %v602 = vpack.c.b16 %v588, %v587
    %v603 = vpack.c.b16 %v590, %v589
    %v604 = vpack.c.b16 %v592, %v591
    %v605 = vpack.c.b16 %v594, %v593
    %v606 = vpack.c.b16 %v596, %v595
    %v607 = vpack.c.b16 %v598, %v597
    %v608 = vpack.c.b16 %v600, %v599
    %617 = vmatpush.bf16.msra.mxu0 %v608
    %618 = vmatpush.bf16.msra.mxu0 %v607
    %619 = vmatpush.bf16.msra.mxu0 %v606
    %620 = vmatpush.bf16.msra.mxu0 %v605
    %621 = vmatpush.bf16.msra.mxu0 %v604
    %622 = vmatpush.bf16.msra.mxu0 %v603
    %623 = vmatpush.bf16.msra.mxu0 %v602
    %624 = vmatpush.bf16.msra.mxu0 %v601
    %625 = vmatmul.bf16.gmra.mxu0 %v536
    %v626 = vpop.f32.mrf.mxu0
    %v627 = vadd.f32 %v567, %v626
    %v628 = vpop.f32.mrf.mxu0
    %v629 = vadd.f32 %v567, %v628
    %630 = vmatmul.bf16.gmra.mxu0 %v537
    %v631 = vpop.f32.mrf.mxu0
    %v632 = vadd.f32 %v567, %v631
    %v633 = vpop.f32.mrf.mxu0
    %v634 = vadd.f32 %v567, %v633
    %635 = vmatmul.bf16.gmra.mxu0 %v538
    %v636 = vpop.f32.mrf.mxu0
    %v637 = vadd.f32 %v567, %v636
    %v638 = vpop.f32.mrf.mxu0
    %v639 = vadd.f32 %v567, %v638
    %640 = vmatmul.bf16.gmra.mxu0 %v539
    %v641 = vpop.f32.mrf.mxu0
    %v642 = vadd.f32 %v567, %v641
    %v643 = vpop.f32.mrf.mxu0
    %v644 = vadd.f32 %v567, %v643
    %645 = vmatmul.bf16.gmra.mxu0 %v540
    %v646 = vpop.f32.mrf.mxu0
    %v647 = vadd.f32 %v567, %v646
    %v648 = vpop.f32.mrf.mxu0
    %v649 = vadd.f32 %v567, %v648
    %650 = vmatmul.bf16.gmra.mxu0 %v541
    %v651 = vpop.f32.mrf.mxu0
    %v652 = vadd.f32 %v567, %v651
    %v653 = vpop.f32.mrf.mxu0
    %v654 = vadd.f32 %v567, %v653
    %655 = vmatmul.bf16.gmra.mxu0 %v542
    %v656 = vpop.f32.mrf.mxu0
    %v657 = vadd.f32 %v567, %v656
    %v658 = vpop.f32.mrf.mxu0
    %v659 = vadd.f32 %v567, %v658
    %660 = vmatmul.bf16.gmra.mxu0 %v543
    %v661 = vpop.f32.mrf.mxu0
    %v662 = vadd.f32 %v567, %v661
    %v663 = vpop.f32.mrf.mxu0
    %v664 = vadd.f32 %v567, %v663
    %665 = vmatmul.bf16.gmra.mxu0 %v544
    %v666 = vpop.f32.mrf.mxu0
    %v667 = vadd.f32 %v567, %v666
    %v668 = vpop.f32.mrf.mxu0
    %v669 = vadd.f32 %v567, %v668
    %670 = vmatmul.bf16.gmra.mxu0 %v545
    %v671 = vpop.f32.mrf.mxu0
    %v672 = vadd.f32 %v567, %v671
    %v673 = vpop.f32.mrf.mxu0
    %v674 = vadd.f32 %v567, %v673
    %675 = vmatmul.bf16.gmra.mxu0 %v546
    %v676 = vpop.f32.mrf.mxu0
    %v677 = vadd.f32 %v567, %v676
    %v678 = vpop.f32.mrf.mxu0
    %v679 = vadd.f32 %v567, %v678
    %680 = vmatmul.bf16.gmra.mxu0 %v547
    %v681 = vpop.f32.mrf.mxu0
    %v682 = vadd.f32 %v567, %v681
    %v683 = vpop.f32.mrf.mxu0
    %v684 = vadd.f32 %v567, %v683
    %685 = vmatmul.bf16.gmra.mxu0 %v548
    %v686 = vpop.f32.mrf.mxu0
    %v687 = vadd.f32 %v567, %v686
    %v688 = vpop.f32.mrf.mxu0
    %689 = vdwg.mxu0
    %v690 = vtanh.pop %v627
    %v691 = vtanh.pop %v629
    %v692 = vtanh.pop %v632
    %v693 = vtanh.pop %v634
    %v694 = vtanh.pop %v637
    %v695 = vtanh.pop %v639
    %v696 = vtanh.pop %v642
    %v697 = vtanh.pop %v644
    %v698 = vtanh.pop %v647
    %v699 = vtanh.pop %v649
    %v700 = vtanh.pop %v652
    %v701 = vtanh.pop %v654
    %v702 = vtanh.pop %v657
    %v703 = vtanh.pop %v659
    %v704 = vtanh.pop %v662
    %v705 = vtanh.pop %v664
    %v706 = vtanh.pop %v667
    %v707 = vtanh.pop %v669
    %v708 = vtanh.pop %v672
    %v709 = vtanh.pop %v674
    %v710 = vtanh.pop %v677
    %v711 = vtanh.pop %v679
    %v712 = vtanh.pop %v682
    %v713 = vtanh.pop %v684
    %v714 = vtanh.pop %v687
    %715 = vst [vmem:[#allocation10] sm:$0xff] %v690
    %716 = vst [vmem:[#allocation10 + $0x8] sm:$0xff] %v691
    %717 = vst [vmem:[#allocation10 + $0x10] sm:$0xff] %v692
    %718 = vst [vmem:[#allocation10 + $0x18] sm:$0xff] %v693
    %719 = vst [vmem:[#allocation10 + $0x20] sm:$0xff] %v694
    %720 = vst [vmem:[#allocation10 + $0x28] sm:$0xff] %v695
    %721 = vst [vmem:[#allocation10 + $0x30] sm:$0xff] %v696
    %722 = vst [vmem:[#allocation10 + $0x38] sm:$0xff] %v697
    %723 = vst [vmem:[#allocation10 + $0x40] sm:$0xff] %v698
    %724 = vst [vmem:[#allocation10 + $0x48] sm:$0xff] %v699
    %725 = vst [vmem:[#allocation10 + $0x50] sm:$0xff] %v700
    %726 = vst [vmem:[#allocation10 + $0x58] sm:$0xff] %v701
    %727 = vst [vmem:[#allocation10 + $0x60] sm:$0xff] %v702
    %728 = vst [vmem:[#allocation10 + $0x68] sm:$0xff] %v703
    %729 = vst [vmem:[#allocation10 + $0x70] sm:$0xff] %v704
    %730 = vst [vmem:[#allocation10 + $0x78] sm:$0xff] %v705
    %731 = vst [vmem:[#allocation10 + $0x80] sm:$0xff] %v706
    %732 = vst [vmem:[#allocation10 + $0x88] sm:$0xff] %v707
    %733 = vst [vmem:[#allocation10 + $0x90] sm:$0xff] %v708
    %734 = vst [vmem:[#allocation10 + $0x98] sm:$0xff] %v709
    %735 = vst [vmem:[#allocation10 + $0xa0] sm:$0xff] %v710
    %736 = vst [vmem:[#allocation10 + $0xa8] sm:$0xff] %v711
    %737 = vst [vmem:[#allocation10 + $0xb0] sm:$0xff] %v712
    %738 = vst [vmem:[#allocation10 + $0xb8] sm:$0xff] %v713
    %739 = vst [vmem:[#allocation10 + $0xc0] sm:$0xff] %v714
    // Predicated region
    $region46: #{tpu_custom_call.1} parent=1 // pred_check
      _
    $region47: #{tpu_custom_call.1} parent=1 // pred_check_branch
      %741 = sbr.rel (0) target = $region49
    $region48: #{tpu_custom_call.1} parent=1 // pred_region
      %743 = vsyncadd [#allocation4], 0
      %s744 = sshll.u32 [#allocation10], 4
      %s745 = int_to_ptr.vmem [resolvable:$true] %s744
      %s746 = sshll.u32 %s7, 4
      %s747 = int_to_ptr.hbm [resolvable:$true] %s746
      %752 = dma.vmem_to_hbm [thread:$0]  %s745, 3200, %s747, [#allocation4], 128, 128, 8
    $region49: #{tpu_custom_call.1} parent=1 // pred_fallthru
      _
    // Predicated region
    $region50: #{tpu_custom_call.1} parent=1 // pred_check
      _
    $region51: #{tpu_custom_call.1} parent=1 // pred_check_branch
      %754 = sbr.rel (0) target = $region53
    $region52: #{tpu_custom_call.1} parent=1 // pred_region
      %756 = dma.done [#allocation4], 3200
    $region53: #{tpu_custom_call.1} parent=1 // pred_fallthru
      _
    %757 = vsyncpa [#allocation3], 1
    %758 = vsyncpa [#allocation6], 1
    %759 = vsyncpa [#allocation9], 1
    %760 = vsyncpa [#allocation4], 1

// kernel: tpu_custom_call.1
$region0: #{tpu_custom_call.1}
  #allocation0 [shape = 'u32[]', space=smem, size = 0x4, offset = 0x4, fixed_abs, tag = 'smem constant byte address 0x4 - core index']
  #allocation1 [shape = 'u32[72,128]{1,0:T(1,128)}', space=vmem, size = 0x9000, scoped, tag = 'internal scratch']
  %s0 = inlined_call_operand.hbm [shape: bf16[200,128], index: 0, kind: input, shape index: {}]
  %s1 = inlined_call_operand.hbm [shape: bf16[128,128], index: 1, kind: input, shape index: {}]
  %s2 = inlined_call_operand.vmem [shape: f32[1,128], index: 2, kind: input, shape index: {}]
  %s3 = inlined_call_operand.hbm [shape: bf16[128,128], index: 3, kind: input, shape index: {}]
  %s4 = inlined_call_operand.vmem [shape: f32[1,128], index: 4, kind: input, shape index: {}]
  %s5 = inlined_call_operand.hbm [shape: bf16[128,128], index: 5, kind: input, shape index: {}]
  %s6 = inlined_call_operand.vmem [shape: f32[1,128], index: 6, kind: input, shape index: {}]
  %s7 = inlined_call_operand.hbm [shape: f32[200,128], index: 7, kind: output, shape index: {}]
  %s8 = sld [smem:[#allocation0]]
  $region54: #{tpu_custom_call.1} parent=0
    _
  %s10 = ssub.s32 1, %s8
  %s11 = scalar_select 0, %s10, %s8
  $region1: #{tpu_custom_call.1} parent=0
    #allocation2 [shape = 'u8[51200]{0}', space=vmem, size = 0xc800, scoped, tag = 'input window, operand 0, single buffered']
    #allocation3 [shape = 's32[1]{0}', space=sflag, size = 0x4, scoped, tag = 'scoped memory for tpu_custom_call.1']
    #allocation4 [shape = 's32[1]{0}', space=sflag, size = 0x4, scoped, tag = 'scoped memory for tpu_custom_call.1']
    #allocation5 [shape = 'u8[32768]{0}', space=vmem, size = 0x8000, scoped, tag = 'input window, operand 1, single buffered']
    #allocation6 [shape = 's32[1]{0}', space=sflag, size = 0x4, scoped, tag = 'scoped memory for tpu_custom_call.1']
    #allocation7 [shape = 'u8[32768]{0}', space=vmem, size = 0x8000, scoped, tag = 'input window, operand 3, single buffered']
    #allocation8 [shape = 'u8[32768]{0}', space=vmem, size = 0x8000, scoped, tag = 'input window, operand 5, single buffered']
    #allocation9 [shape = 's32[1]{0}', space=sflag, size = 0x4, scoped, tag = 'scoped memory for tpu_custom_call.1']
    #allocation10 [shape = 'u8[102400]{0}', space=vmem, size = 0x19000, scoped, tag = 'output window, operand 0, single buffered']
    %12 = vsyncpa [#allocation3], 0
    %13 = vsyncpa [#allocation6], 0
    %14 = vsyncpa [#allocation9], 0
    %15 = vsyncpa [#allocation4], 0
    // Predicated region
    $region2: #{tpu_custom_call.1} parent=1 // pred_check
      _
    $region3: #{tpu_custom_call.1} parent=1 // pred_check_branch
      %17 = sbr.rel (0) target = $region5
    $region4: #{tpu_custom_call.1} parent=1 // pred_region
      %19 = vsyncadd [#allocation3], 0
      %s20 = sshll.u32 %s0, 4
      %s21 = int_to_ptr.hbm [resolvable:$true] %s20
      %s22 = sshll.u32 [#allocation2], 4
      %s23 = int_to_ptr.vmem [resolvable:$true] %s22
      %28 = dma.hbm_to_vmem [thread:$0]  %s21, 1600, %s23, [#allocation3], 64, 64, 4
    $region5: #{tpu_custom_call.1} parent=1 // pred_fallthru
      _
    // Predicated region
    $region6: #{tpu_custom_call.1} parent=1 // pred_check
      _
    $region7: #{tpu_custom_call.1} parent=1 // pred_check_branch
      %30 = sbr.rel (0) target = $region9
    $region8: #{tpu_custom_call.1} parent=1 // pred_region
      %32 = vsyncadd [#allocation6], 0
      %s33 = sshll.u32 %s1, 4
      %s34 = int_to_ptr.hbm [resolvable:$true] %s33
      %s35 = sshll.u32 [#allocation5], 4
      %s36 = int_to_ptr.vmem [resolvable:$true] %s35
      %41 = dma.hbm_to_vmem [thread:$0]  %s34, 1024, %s36, [#allocation6], 64, 64, 4
    $region9: #{tpu_custom_call.1} parent=1 // pred_fallthru
      _
    // Predicated region
    $region10: #{tpu_custom_call.1} parent=1 // pred_check
      _
    $region11: #{tpu_custom_call.1} parent=1 // pred_check_branch
      %43 = sbr.rel (0) target = $region13
    $region12: #{tpu_custom_call.1} parent=1 // pred_region
      _
    $region13: #{tpu_custom_call.1} parent=1 // pred_fallthru
      _
    // Predicated region
    $region14: #{tpu_custom_call.1} parent=1 // pred_check
      _
    $region15: #{tpu_custom_call.1} parent=1 // pred_check_branch
      %45 = sbr.rel (0) target = $region17
    $region16: #{tpu_custom_call.1} parent=1 // pred_region
      %47 = vsyncadd [#allocation6], 0
      %s48 = sshll.u32 %s3, 4
      %s49 = int_to_ptr.hbm [resolvable:$true] %s48
      %s50 = sshll.u32 [#allocation7], 4
      %s51 = int_to_ptr.vmem [resolvable:$true] %s50
      %56 = dma.hbm_to_vmem [thread:$0]  %s49, 1024, %s51, [#allocation6], 64, 64, 4
    $region17: #{tpu_custom_call.1} parent=1 // pred_fallthru
      _
    // Predicated region
    $region18: #{tpu_custom_call.1} parent=1 // pred_check
      _
    $region19: #{tpu_custom_call.1} parent=1 // pred_check_branch
      %58 = sbr.rel (0) target = $region21
    $region20: #{tpu_custom_call.1} parent=1 // pred_region
      _
    $region21: #{tpu_custom_call.1} parent=1 // pred_fallthru
      _
    // Predicated region
    $region22: #{tpu_custom_call.1} parent=1 // pred_check
      _
    $region23: #{tpu_custom_call.1} parent=1 // pred_check_branch
      %60 = sbr.rel (0) target = $region25
    $region24: #{tpu_custom_call.1} parent=1 // pred_region
      %62 = vsyncadd [#allocation9], 0
      %s63 = sshll.u32 %s5, 4
      %s64 = int_to_ptr.hbm [resolvable:$true] %s63
      %s65 = sshll.u32 [#allocation8], 4
      %s66 = int_to_ptr.vmem [resolvable:$true] %s65
      %71 = dma.hbm_to_vmem [thread:$0]  %s64, 1024, %s66, [#allocation9], 64, 64, 4
    $region25: #{tpu_custom_call.1} parent=1 // pred_fallthru
      _
    // Predicated region
    $region26: #{tpu_custom_call.1} parent=1 // pred_check
      _
    $region27: #{tpu_custom_call.1} parent=1 // pred_check_branch
      %73 = sbr.rel (0) target = $region29
    $region28: #{tpu_custom_call.1} parent=1 // pred_region
      _
    $region29: #{tpu_custom_call.1} parent=1 // pred_fallthru
      _
    // Predicated region
    $region30: #{tpu_custom_call.1} parent=1 // pred_check
      _
    $region31: #{tpu_custom_call.1} parent=1 // pred_check_branch
      %75 = sbr.rel (0) target = $region33
    $region32: #{tpu_custom_call.1} parent=1 // pred_region
      %77 = dma.done [#allocation3], 1600
    $region33: #{tpu_custom_call.1} parent=1 // pred_fallthru
      _
    // Predicated region
    $region34: #{tpu_custom_call.1} parent=1 // pred_check
      _
    $region35: #{tpu_custom_call.1} parent=1 // pred_check_branch
      %79 = sbr.rel (0) target = $region37
    $region36: #{tpu_custom_call.1} parent=1 // pred_region
      %81 = dma.done [#allocation6], 1024
    $region37: #{tpu_custom_call.1} parent=1 // pred_fallthru
      _
    // Predicated region
    $region38: #{tpu_custom_call.1} parent=1 // pred_check
      _
    $region39: #{tpu_custom_call.1} parent=1 // pred_check_branch
      %83 = sbr.rel (0) target = $region41
    $region40: #{tpu_custom_call.1} parent=1 // pred_region
      %85 = dma.done [#allocation6], 1024
    $region41: #{tpu_custom_call.1} parent=1 // pred_fallthru
      _
    // Predicated region
    $region42: #{tpu_custom_call.1} parent=1 // pred_check
      _
    $region43: #{tpu_custom_call.1} parent=1 // pred_check_branch
      %87 = sbr.rel (0) target = $region45
    $region44: #{tpu_custom_call.1} parent=1 // pred_region
      %89 = dma.done [#allocation9], 1024
    $region45: #{tpu_custom_call.1} parent=1 // pred_fallthru
      _
    %v90 = vld [vmem:[#allocation2] sm:$0xf]
    %v91 = vld [vmem:[#allocation2 + $0x4] sm:$0xf]
    %v92 = vld [vmem:[#allocation2 + $0x8] sm:$0xf]
    %v93 = vld [vmem:[#allocation2 + $0xc] sm:$0xf]
    %v94 = vld [vmem:[#allocation2 + $0x10] sm:$0xf]
    %v95 = vld [vmem:[#allocation2 + $0x14] sm:$0xf]
    %v96 = vld [vmem:[#allocation2 + $0x18] sm:$0xf]
    %v97 = vld [vmem:[#allocation2 + $0x1c] sm:$0xf]
    %v98 = vld [vmem:[#allocation2 + $0x20] sm:$0xf]
    %v99 = vld [vmem:[#allocation2 + $0x24] sm:$0xf]
    %v100 = vld [vmem:[#allocation2 + $0x28] sm:$0xf]
    %v101 = vld [vmem:[#allocation2 + $0x2c] sm:$0xf]
    %v102 = vld [vmem:[#allocation2 + $0x30] sm:$0xf]
    %v103 = vld [vmem:[#allocation2 + $0x34] sm:$0xf]
    %v104 = vld [vmem:[#allocation2 + $0x38] sm:$0xf]
    %v105 = vld [vmem:[#allocation2 + $0x3c] sm:$0xf]
    %v106 = vld [vmem:[#allocation2 + $0x40] sm:$0xf]
    %v107 = vld [vmem:[#allocation2 + $0x44] sm:$0xf]
    %v108 = vld [vmem:[#allocation2 + $0x48] sm:$0xf]
    %v109 = vld [vmem:[#allocation2 + $0x4c] sm:$0xf]
    %v110 = vld [vmem:[#allocation2 + $0x50] sm:$0xf]
    %v111 = vld [vmem:[#allocation2 + $0x54] sm:$0xf]
    %v112 = vld [vmem:[#allocation2 + $0x58] sm:$0xf]
    %v113 = vld [vmem:[#allocation2 + $0x5c] sm:$0xf]
    %v114 = vld [vmem:[#allocation2 + $0x60] sm:$0xf]
    %v115 = vld [vmem:[#allocation5] sm:$0xf]
    %v116 = vld [vmem:[#allocation5 + $0x4] sm:$0xf]
    %v117 = vld [vmem:[#allocation5 + $0x8] sm:$0xf]
    %v118 = vld [vmem:[#allocation5 + $0xc] sm:$0xf]
    %v119 = vld [vmem:[#allocation5 + $0x10] sm:$0xf]
    %v120 = vld [vmem:[#allocation5 + $0x14] sm:$0xf]
    %v121 = vld [vmem:[#allocation5 + $0x18] sm:$0xf]
    %v122 = vld [vmem:[#allocation5 + $0x1c] sm:$0xf]
    %v123 = vld [vmem:[#allocation5 + $0x20] sm:$0xf]
    %v124 = vld [vmem:[#allocation5 + $0x24] sm:$0xf]
    %v125 = vld [vmem:[#allocation5 + $0x28] sm:$0xf]
    %v126 = vld [vmem:[#allocation5 + $0x2c] sm:$0xf]
    %v127 = vld [vmem:[#allocation5 + $0x30] sm:$0xf]
    %v128 = vld [vmem:[#allocation5 + $0x34] sm:$0xf]
    %v129 = vld [vmem:[#allocation5 + $0x38] sm:$0xf]
    %v130 = vld [vmem:[#allocation5 + $0x3c] sm:$0xf]
    %v131 = vld [vmem:[%s2] sm:$0x1]
    %v133 = vperm.slane %v131, 0
    %v160 = vunpack.c.l.b16 %v90
    %v161 = vunpack.c.l.b16 %v91
    %v162 = vunpack.c.l.b16 %v92
    %v163 = vunpack.c.l.b16 %v93
    %v164 = vunpack.c.l.b16 %v94
    %v165 = vunpack.c.l.b16 %v95
    %v166 = vunpack.c.l.b16 %v96
    %v167 = vunpack.c.l.b16 %v97
    %v168 = vunpack.c.l.b16 %v98
    %v169 = vunpack.c.l.b16 %v99
    %v170 = vunpack.c.l.b16 %v100
    %v171 = vunpack.c.l.b16 %v101
    %v172 = vunpack.c.l.b16 %v102
    %v173 = vunpack.c.l.b16 %v103
    %v174 = vunpack.c.l.b16 %v104
    %v175 = vunpack.c.l.b16 %v105
    %v176 = vunpack.c.l.b16 %v106
    %v177 = vunpack.c.l.b16 %v107
    %v178 = vunpack.c.l.b16 %v108
    %v179 = vunpack.c.l.b16 %v109
    %v180 = vunpack.c.l.b16 %v110
    %v181 = vunpack.c.l.b16 %v111
    %v182 = vunpack.c.l.b16 %v112
    %v183 = vunpack.c.l.b16 %v113
    %v184 = vunpack.c.l.b16 %v114
    %v185 = vpack.c.b16 %v161, %v160
    %v186 = vpack.c.b16 %v163, %v162
    %v187 = vpack.c.b16 %v165, %v164
    %v188 = vpack.c.b16 %v167, %v166
    %v189 = vpack.c.b16 %v169, %v168
    %v190 = vpack.c.b16 %v171, %v170
    %v191 = vpack.c.b16 %v173, %v172
    %v192 = vpack.c.b16 %v175, %v174
    %v193 = vpack.c.b16 %v177, %v176
    %v194 = vpack.c.b16 %v179, %v178
    %v195 = vpack.c.b16 %v181, %v180
    %v196 = vpack.c.b16 %v183, %v182
    %v197 = vpack.c.b16 %v184, %v184
    %v227 = vunpack.c.l.b16 %v115
    %v228 = vunpack.c.l.b16 %v116
    %v229 = vunpack.c.l.b16 %v117
    %v230 = vunpack.c.l.b16 %v118
    %v231 = vunpack.c.l.b16 %v119
    %v232 = vunpack.c.l.b16 %v120
    %v233 = vunpack.c.l.b16 %v121
    %v234 = vunpack.c.l.b16 %v122
    %v235 = vunpack.c.l.b16 %v123
    %v236 = vunpack.c.l.b16 %v124
    %v237 = vunpack.c.l.b16 %v125
    %v238 = vunpack.c.l.b16 %v126
    %v239 = vunpack.c.l.b16 %v127
    %v240 = vunpack.c.l.b16 %v128
    %v241 = vunpack.c.l.b16 %v129
    %v242 = vunpack.c.l.b16 %v130
    %v243 = vpack.c.b16 %v228, %v227
    %v244 = vpack.c.b16 %v230, %v229
    %v245 = vpack.c.b16 %v232, %v231
    %v246 = vpack.c.b16 %v234, %v233
    %v247 = vpack.c.b16 %v236, %v235
    %v248 = vpack.c.b16 %v238, %v237
    %v249 = vpack.c.b16 %v240, %v239
    %v250 = vpack.c.b16 %v242, %v241
    %259 = vmatpush.bf16.msra.mxu0 %v250
    %260 = vmatpush.bf16.msra.mxu0 %v249
    %261 = vmatpush.bf16.msra.mxu0 %v248
    %262 = vmatpush.bf16.msra.mxu0 %v247
    %263 = vmatpush.bf16.msra.mxu0 %v246
    %264 = vmatpush.bf16.msra.mxu0 %v245
    %265 = vmatpush.bf16.msra.mxu0 %v244
    %266 = vmatpush.bf16.msra.mxu0 %v243
    %267 = vmatmul.bf16.gmra.mxu0 %v185
    %v268 = vpop.f32.mrf.mxu0
    %v269 = vadd.f32 %v133, %v268
    %v270 = vpop.f32.mrf.mxu0
    %v271 = vadd.f32 %v133, %v270
    %272 = vmatmul.bf16.gmra.mxu0 %v186
    %v273 = vpop.f32.mrf.mxu0
    %v274 = vadd.f32 %v133, %v273
    %v275 = vpop.f32.mrf.mxu0
    %v276 = vadd.f32 %v133, %v275
    %277 = vmatmul.bf16.gmra.mxu0 %v187
    %v278 = vpop.f32.mrf.mxu0
    %v279 = vadd.f32 %v133, %v278
    %v280 = vpop.f32.mrf.mxu0
    %v281 = vadd.f32 %v133, %v280
    %282 = vmatmul.bf16.gmra.mxu0 %v188
    %v283 = vpop.f32.mrf.mxu0
    %v284 = vadd.f32 %v133, %v283
    %v285 = vpop.f32.mrf.mxu0
    %v286 = vadd.f32 %v133, %v285
    %287 = vmatmul.bf16.gmra.mxu0 %v189
    %v288 = vpop.f32.mrf.mxu0
    %v289 = vadd.f32 %v133, %v288
    %v290 = vpop.f32.mrf.mxu0
    %v291 = vadd.f32 %v133, %v290
    %292 = vmatmul.bf16.gmra.mxu0 %v190
    %v293 = vpop.f32.mrf.mxu0
    %v294 = vadd.f32 %v133, %v293
    %v295 = vpop.f32.mrf.mxu0
    %v296 = vadd.f32 %v133, %v295
    %297 = vmatmul.bf16.gmra.mxu0 %v191
    %v298 = vpop.f32.mrf.mxu0
    %v299 = vadd.f32 %v133, %v298
    %v300 = vpop.f32.mrf.mxu0
    %v301 = vadd.f32 %v133, %v300
    %302 = vmatmul.bf16.gmra.mxu0 %v192
    %v303 = vpop.f32.mrf.mxu0
    %v304 = vadd.f32 %v133, %v303
    %v305 = vpop.f32.mrf.mxu0
    %v306 = vadd.f32 %v133, %v305
    %307 = vmatmul.bf16.gmra.mxu0 %v193
    %v308 = vpop.f32.mrf.mxu0
    %v309 = vadd.f32 %v133, %v308
    %v310 = vpop.f32.mrf.mxu0
    %v311 = vadd.f32 %v133, %v310
    %312 = vmatmul.bf16.gmra.mxu0 %v194
    %v313 = vpop.f32.mrf.mxu0
    %v314 = vadd.f32 %v133, %v313
    %v315 = vpop.f32.mrf.mxu0
    %v316 = vadd.f32 %v133, %v315
    %317 = vmatmul.bf16.gmra.mxu0 %v195
    %v318 = vpop.f32.mrf.mxu0
    %v319 = vadd.f32 %v133, %v318
    %v320 = vpop.f32.mrf.mxu0
    %v321 = vadd.f32 %v133, %v320
    %322 = vmatmul.bf16.gmra.mxu0 %v196
    %v323 = vpop.f32.mrf.mxu0
    %v324 = vadd.f32 %v133, %v323
    %v325 = vpop.f32.mrf.mxu0
    %v326 = vadd.f32 %v133, %v325
    %327 = vmatmul.bf16.gmra.mxu0 %v197
    %v328 = vpop.f32.mrf.mxu0
    %v329 = vadd.f32 %v133, %v328
    %v330 = vpop.f32.mrf.mxu0
    %331 = vdwg.mxu0
    %v332 = vmax.f32 %v269, 0.0
    %v333 = vmax.f32 %v271, 0.0
    %v334 = vmax.f32 %v274, 0.0
    %v335 = vmax.f32 %v276, 0.0
    %v336 = vmax.f32 %v279, 0.0
    %v337 = vmax.f32 %v281, 0.0
    %v338 = vmax.f32 %v284, 0.0
    %v339 = vmax.f32 %v286, 0.0
    %v340 = vmax.f32 %v289, 0.0
    %v341 = vmax.f32 %v291, 0.0
    %v342 = vmax.f32 %v294, 0.0
    %v343 = vmax.f32 %v296, 0.0
    %v344 = vmax.f32 %v299, 0.0
    %v345 = vmax.f32 %v301, 0.0
    %v346 = vmax.f32 %v304, 0.0
    %v347 = vmax.f32 %v306, 0.0
    %v348 = vmax.f32 %v309, 0.0
    %v349 = vmax.f32 %v311, 0.0
    %v350 = vmax.f32 %v314, 0.0
    %v351 = vmax.f32 %v316, 0.0
    %v352 = vmax.f32 %v319, 0.0
    %v353 = vmax.f32 %v321, 0.0
    %v354 = vmax.f32 %v324, 0.0
    %v355 = vmax.f32 %v326, 0.0
    %v356 = vmax.f32 %v329, 0.0
    %v357 = vpack.c.bf16 %v333, %v332
    %v358 = vpack.c.bf16 %v335, %v334
    %v359 = vpack.c.bf16 %v337, %v336
    %v360 = vpack.c.bf16 %v339, %v338
    %v361 = vpack.c.bf16 %v341, %v340
    %v362 = vpack.c.bf16 %v343, %v342
    %v363 = vpack.c.bf16 %v345, %v344
    %v364 = vpack.c.bf16 %v347, %v346
    %v365 = vpack.c.bf16 %v349, %v348
    %v366 = vpack.c.bf16 %v351, %v350
    %v367 = vpack.c.bf16 %v353, %v352
    %v368 = vpack.c.bf16 %v355, %v354
    %v369 = vpack.c.bf16 %v356, %v356
    %v370 = vld [vmem:[#allocation7] sm:$0xf]
    %v371 = vld [vmem:[#allocation7 + $0x4] sm:$0xf]
    %v372 = vld [vmem:[#allocation7 + $0x8] sm:$0xf]
    %v373 = vld [vmem:[#allocation7 + $0xc] sm:$0xf]
    %v374 = vld [vmem:[#allocation7 + $0x10] sm:$0xf]
    %v375 = vld [vmem:[#allocation7 + $0x14] sm:$0xf]
    %v376 = vld [vmem:[#allocation7 + $0x18] sm:$0xf]
    %v377 = vld [vmem:[#allocation7 + $0x1c] sm:$0xf]
    %v378 = vld [vmem:[#allocation7 + $0x20] sm:$0xf]
    %v379 = vld [vmem:[#allocation7 + $0x24] sm:$0xf]
    %v380 = vld [vmem:[#allocation7 + $0x28] sm:$0xf]
    %v381 = vld [vmem:[#allocation7 + $0x2c] sm:$0xf]
    %v382 = vld [vmem:[#allocation7 + $0x30] sm:$0xf]
    %v383 = vld [vmem:[#allocation7 + $0x34] sm:$0xf]
    %v384 = vld [vmem:[#allocation7 + $0x38] sm:$0xf]
    %v385 = vld [vmem:[#allocation7 + $0x3c] sm:$0xf]
    %v386 = vld [vmem:[%s4] sm:$0x1]
    %v388 = vperm.slane %v386, 0
    %v406 = vunpack.c.l.b16 %v370
    %v407 = vunpack.c.l.b16 %v371
    %v408 = vunpack.c.l.b16 %v372
    %v409 = vunpack.c.l.b16 %v373
    %v410 = vunpack.c.l.b16 %v374
    %v411 = vunpack.c.l.b16 %v375
    %v412 = vunpack.c.l.b16 %v376
    %v413 = vunpack.c.l.b16 %v377
    %v414 = vunpack.c.l.b16 %v378
    %v415 = vunpack.c.l.b16 %v379
    %v416 = vunpack.c.l.b16 %v380
    %v417 = vunpack.c.l.b16 %v381
    %v418 = vunpack.c.l.b16 %v382
    %v419 = vunpack.c.l.b16 %v383
    %v420 = vunpack.c.l.b16 %v384
    %v421 = vunpack.c.l.b16 %v385
    %v422 = vpack.c.b16 %v407, %v406
    %v423 = vpack.c.b16 %v409, %v408
    %v424 = vpack.c.b16 %v411, %v410
    %v425 = vpack.c.b16 %v413, %v412
    %v426 = vpack.c.b16 %v415, %v414
    %v427 = vpack.c.b16 %v417, %v416
    %v428 = vpack.c.b16 %v419, %v418
    %v429 = vpack.c.b16 %v421, %v420
    %438 = vmatpush.bf16.msra.mxu0 %v429
    %439 = vmatpush.bf16.msra.mxu0 %v428
    %440 = vmatpush.bf16.msra.mxu0 %v427
    %441 = vmatpush.bf16.msra.mxu0 %v426
    %442 = vmatpush.bf16.msra.mxu0 %v425
    %443 = vmatpush.bf16.msra.mxu0 %v424
    %444 = vmatpush.bf16.msra.mxu0 %v423
    %445 = vmatpush.bf16.msra.mxu0 %v422
    %446 = vmatmul.bf16.gmra.mxu0 %v357
    %v447 = vpop.f32.mrf.mxu0
    %v448 = vadd.f32 %v388, %v447
    %v449 = vpop.f32.mrf.mxu0
    %v450 = vadd.f32 %v388, %v449
    %451 = vmatmul.bf16.gmra.mxu0 %v358
    %v452 = vpop.f32.mrf.mxu0
    %v453 = vadd.f32 %v388, %v452
    %v454 = vpop.f32.mrf.mxu0
    %v455 = vadd.f32 %v388, %v454
    %456 = vmatmul.bf16.gmra.mxu0 %v359
    %v457 = vpop.f32.mrf.mxu0
    %v458 = vadd.f32 %v388, %v457
    %v459 = vpop.f32.mrf.mxu0
    %v460 = vadd.f32 %v388, %v459
    %461 = vmatmul.bf16.gmra.mxu0 %v360
    %v462 = vpop.f32.mrf.mxu0
    %v463 = vadd.f32 %v388, %v462
    %v464 = vpop.f32.mrf.mxu0
    %v465 = vadd.f32 %v388, %v464
    %466 = vmatmul.bf16.gmra.mxu0 %v361
    %v467 = vpop.f32.mrf.mxu0
    %v468 = vadd.f32 %v388, %v467
    %v469 = vpop.f32.mrf.mxu0
    %v470 = vadd.f32 %v388, %v469
    %471 = vmatmul.bf16.gmra.mxu0 %v362
    %v472 = vpop.f32.mrf.mxu0
    %v473 = vadd.f32 %v388, %v472
    %v474 = vpop.f32.mrf.mxu0
    %v475 = vadd.f32 %v388, %v474
    %476 = vmatmul.bf16.gmra.mxu0 %v363
    %v477 = vpop.f32.mrf.mxu0
    %v478 = vadd.f32 %v388, %v477
    %v479 = vpop.f32.mrf.mxu0
    %v480 = vadd.f32 %v388, %v479
    %481 = vmatmul.bf16.gmra.mxu0 %v364
    %v482 = vpop.f32.mrf.mxu0
    %v483 = vadd.f32 %v388, %v482
    %v484 = vpop.f32.mrf.mxu0
    %v485 = vadd.f32 %v388, %v484
    %486 = vmatmul.bf16.gmra.mxu0 %v365
    %v487 = vpop.f32.mrf.mxu0
    %v488 = vadd.f32 %v388, %v487
    %v489 = vpop.f32.mrf.mxu0
    %v490 = vadd.f32 %v388, %v489
    %491 = vmatmul.bf16.gmra.mxu0 %v366
    %v492 = vpop.f32.mrf.mxu0
    %v493 = vadd.f32 %v388, %v492
    %v494 = vpop.f32.mrf.mxu0
    %v495 = vadd.f32 %v388, %v494
    %496 = vmatmul.bf16.gmra.mxu0 %v367
    %v497 = vpop.f32.mrf.mxu0
    %v498 = vadd.f32 %v388, %v497
    %v499 = vpop.f32.mrf.mxu0
    %v500 = vadd.f32 %v388, %v499
    %501 = vmatmul.bf16.gmra.mxu0 %v368
    %v502 = vpop.f32.mrf.mxu0
    %v503 = vadd.f32 %v388, %v502
    %v504 = vpop.f32.mrf.mxu0
    %v505 = vadd.f32 %v388, %v504
    %506 = vmatmul.bf16.gmra.mxu0 %v369
    %v507 = vpop.f32.mrf.mxu0
    %v508 = vadd.f32 %v388, %v507
    %v509 = vpop.f32.mrf.mxu0
    %510 = vdwg.mxu0
    %v511 = vmax.f32 %v448, 0.0
    %v512 = vmax.f32 %v450, 0.0
    %v513 = vmax.f32 %v453, 0.0
    %v514 = vmax.f32 %v455, 0.0
    %v515 = vmax.f32 %v458, 0.0
    %v516 = vmax.f32 %v460, 0.0
    %v517 = vmax.f32 %v463, 0.0
    %v518 = vmax.f32 %v465, 0.0
    %v519 = vmax.f32 %v468, 0.0
    %v520 = vmax.f32 %v470, 0.0
    %v521 = vmax.f32 %v473, 0.0
    %v522 = vmax.f32 %v475, 0.0
    %v523 = vmax.f32 %v478, 0.0
    %v524 = vmax.f32 %v480, 0.0
    %v525 = vmax.f32 %v483, 0.0
    %v526 = vmax.f32 %v485, 0.0
    %v527 = vmax.f32 %v488, 0.0
    %v528 = vmax.f32 %v490, 0.0
    %v529 = vmax.f32 %v493, 0.0
    %v530 = vmax.f32 %v495, 0.0
    %v531 = vmax.f32 %v498, 0.0
    %v532 = vmax.f32 %v500, 0.0
    %v533 = vmax.f32 %v503, 0.0
    %v534 = vmax.f32 %v505, 0.0
    %v535 = vmax.f32 %v508, 0.0
    %v536 = vpack.c.bf16 %v512, %v511
    %v537 = vpack.c.bf16 %v514, %v513
    %v538 = vpack.c.bf16 %v516, %v515
    %v539 = vpack.c.bf16 %v518, %v517
    %v540 = vpack.c.bf16 %v520, %v519
    %v541 = vpack.c.bf16 %v522, %v521
    %v542 = vpack.c.bf16 %v524, %v523
    %v543 = vpack.c.bf16 %v526, %v525
    %v544 = vpack.c.bf16 %v528, %v527
    %v545 = vpack.c.bf16 %v530, %v529
    %v546 = vpack.c.bf16 %v532, %v531
    %v547 = vpack.c.bf16 %v534, %v533
    %v548 = vpack.c.bf16 %v535, %v535
    %v549 = vld [vmem:[#allocation8] sm:$0xf]
    %v550 = vld [vmem:[#allocation8 + $0x4] sm:$0xf]
    %v551 = vld [vmem:[#allocation8 + $0x8] sm:$0xf]
    %v552 = vld [vmem:[#allocation8 + $0xc] sm:$0xf]
    %v553 = vld [vmem:[#allocation8 + $0x10] sm:$0xf]
    %v554 = vld [vmem:[#allocation8 + $0x14] sm:$0xf]
    %v555 = vld [vmem:[#allocation8 + $0x18] sm:$0xf]
    %v556 = vld [vmem:[#allocation8 + $0x1c] sm:$0xf]
    %v557 = vld [vmem:[#allocation8 + $0x20] sm:$0xf]
    %v558 = vld [vmem:[#allocation8 + $0x24] sm:$0xf]
    %v559 = vld [vmem:[#allocation8 + $0x28] sm:$0xf]
    %v560 = vld [vmem:[#allocation8 + $0x2c] sm:$0xf]
    %v561 = vld [vmem:[#allocation8 + $0x30] sm:$0xf]
    %v562 = vld [vmem:[#allocation8 + $0x34] sm:$0xf]
    %v563 = vld [vmem:[#allocation8 + $0x38] sm:$0xf]
    %v564 = vld [vmem:[#allocation8 + $0x3c] sm:$0xf]
    %v565 = vld [vmem:[%s6] sm:$0x1]
    %v567 = vperm.slane %v565, 0
    %v585 = vunpack.c.l.b16 %v549
    %v586 = vunpack.c.l.b16 %v550
    %v587 = vunpack.c.l.b16 %v551
    %v588 = vunpack.c.l.b16 %v552
    %v589 = vunpack.c.l.b16 %v553
    %v590 = vunpack.c.l.b16 %v554
    %v591 = vunpack.c.l.b16 %v555
    %v592 = vunpack.c.l.b16 %v556
    %v593 = vunpack.c.l.b16 %v557
    %v594 = vunpack.c.l.b16 %v558
    %v595 = vunpack.c.l.b16 %v559
    %v596 = vunpack.c.l.b16 %v560
    %v597 = vunpack.c.l.b16 %v561
    %v598 = vunpack.c.l.b16 %v562
    %v599 = vunpack.c.l.b16 %v563
    %v600 = vunpack.c.l.b16 %v564
    %v601 = vpack.c.b16 %v586, %v585
    %v602 = vpack.c.b16 %v588, %v587
    %v603 = vpack.c.b16 %v590, %v589
    %v604 = vpack.c.b16 %v592, %v591
    %v605 = vpack.c.b16 %v594, %v593
    %v606 = vpack.c.b16 %v596, %v595
    %v607 = vpack.c.b16 %v598, %v597
    %v608 = vpack.c.b16 %v600, %v599
    %617 = vmatpush.bf16.msra.mxu0 %v608
    %618 = vmatpush.bf16.msra.mxu0 %v607
    %619 = vmatpush.bf16.msra.mxu0 %v606
    %620 = vmatpush.bf16.msra.mxu0 %v605
    %621 = vmatpush.bf16.msra.mxu0 %v604
    %622 = vmatpush.bf16.msra.mxu0 %v603
    %623 = vmatpush.bf16.msra.mxu0 %v602
    %624 = vmatpush.bf16.msra.mxu0 %v601
    %625 = vmatmul.bf16.gmra.mxu0 %v536
    %v626 = vpop.f32.mrf.mxu0
    %v627 = vadd.f32 %v567, %v626
    %v628 = vpop.f32.mrf.mxu0
    %v629 = vadd.f32 %v567, %v628
    %630 = vmatmul.bf16.gmra.mxu0 %v537
    %v631 = vpop.f32.mrf.mxu0
    %v632 = vadd.f32 %v567, %v631
    %v633 = vpop.f32.mrf.mxu0
    %v634 = vadd.f32 %v567, %v633
    %635 = vmatmul.bf16.gmra.mxu0 %v538
    %v636 = vpop.f32.mrf.mxu0
    %v637 = vadd.f32 %v567, %v636
    %v638 = vpop.f32.mrf.mxu0
    %v639 = vadd.f32 %v567, %v638
    %640 = vmatmul.bf16.gmra.mxu0 %v539
    %v641 = vpop.f32.mrf.mxu0
    %v642 = vadd.f32 %v567, %v641
    %v643 = vpop.f32.mrf.mxu0
    %v644 = vadd.f32 %v567, %v643
    %645 = vmatmul.bf16.gmra.mxu0 %v540
    %v646 = vpop.f32.mrf.mxu0
    %v647 = vadd.f32 %v567, %v646
    %v648 = vpop.f32.mrf.mxu0
    %v649 = vadd.f32 %v567, %v648
    %650 = vmatmul.bf16.gmra.mxu0 %v541
    %v651 = vpop.f32.mrf.mxu0
    %v652 = vadd.f32 %v567, %v651
    %v653 = vpop.f32.mrf.mxu0
    %v654 = vadd.f32 %v567, %v653
    %655 = vmatmul.bf16.gmra.mxu0 %v542
    %v656 = vpop.f32.mrf.mxu0
    %v657 = vadd.f32 %v567, %v656
    %v658 = vpop.f32.mrf.mxu0
    %v659 = vadd.f32 %v567, %v658
    %660 = vmatmul.bf16.gmra.mxu0 %v543
    %v661 = vpop.f32.mrf.mxu0
    %v662 = vadd.f32 %v567, %v661
    %v663 = vpop.f32.mrf.mxu0
    %v664 = vadd.f32 %v567, %v663
    %665 = vmatmul.bf16.gmra.mxu0 %v544
    %v666 = vpop.f32.mrf.mxu0
    %v667 = vadd.f32 %v567, %v666
    %v668 = vpop.f32.mrf.mxu0
    %v669 = vadd.f32 %v567, %v668
    %670 = vmatmul.bf16.gmra.mxu0 %v545
    %v671 = vpop.f32.mrf.mxu0
    %v672 = vadd.f32 %v567, %v671
    %v673 = vpop.f32.mrf.mxu0
    %v674 = vadd.f32 %v567, %v673
    %675 = vmatmul.bf16.gmra.mxu0 %v546
    %v676 = vpop.f32.mrf.mxu0
    %v677 = vadd.f32 %v567, %v676
    %v678 = vpop.f32.mrf.mxu0
    %v679 = vadd.f32 %v567, %v678
    %680 = vmatmul.bf16.gmra.mxu0 %v547
    %v681 = vpop.f32.mrf.mxu0
    %v682 = vadd.f32 %v567, %v681
    %v683 = vpop.f32.mrf.mxu0
    %v684 = vadd.f32 %v567, %v683
    %685 = vmatmul.bf16.gmra.mxu0 %v548
    %v686 = vpop.f32.mrf.mxu0
    %v687 = vadd.f32 %v567, %v686
    %v688 = vpop.f32.mrf.mxu0
    %689 = vdwg.mxu0
    %v690 = vtanh.pop %v627
    %v691 = vtanh.pop %v629
    %v692 = vtanh.pop %v632
    %v693 = vtanh.pop %v634
    %v694 = vtanh.pop %v637
    %v695 = vtanh.pop %v639
    %v696 = vtanh.pop %v642
    %v697 = vtanh.pop %v644
    %v698 = vtanh.pop %v647
    %v699 = vtanh.pop %v649
    %v700 = vtanh.pop %v652
    %v701 = vtanh.pop %v654
    %v702 = vtanh.pop %v657
    %v703 = vtanh.pop %v659
    %v704 = vtanh.pop %v662
    %v705 = vtanh.pop %v664
    %v706 = vtanh.pop %v667
    %v707 = vtanh.pop %v669
    %v708 = vtanh.pop %v672
    %v709 = vtanh.pop %v674
    %v710 = vtanh.pop %v677
    %v711 = vtanh.pop %v679
    %v712 = vtanh.pop %v682
    %v713 = vtanh.pop %v684
    %v714 = vtanh.pop %v687
    %715 = vst [vmem:[#allocation10] sm:$0xff] %v690
    %716 = vst [vmem:[#allocation10 + $0x8] sm:$0xff] %v691
    %717 = vst [vmem:[#allocation10 + $0x10] sm:$0xff] %v692
    %718 = vst [vmem:[#allocation10 + $0x18] sm:$0xff] %v693
    %719 = vst [vmem:[#allocation10 + $0x20] sm:$0xff] %v694
    %720 = vst [vmem:[#allocation10 + $0x28] sm:$0xff] %v695
    %721 = vst [vmem:[#allocation10 + $0x30] sm:$0xff] %v696
    %722 = vst [vmem:[#allocation10 + $0x38] sm:$0xff] %v697
    %723 = vst [vmem:[#allocation10 + $0x40] sm:$0xff] %v698
    %724 = vst [vmem:[#allocation10 + $0x48] sm:$0xff] %v699
    %725 = vst [vmem:[#allocation10 + $0x50] sm:$0xff] %v700
    %726 = vst [vmem:[#allocation10 + $0x58] sm:$0xff] %v701
    %727 = vst [vmem:[#allocation10 + $0x60] sm:$0xff] %v702
    %728 = vst [vmem:[#allocation10 + $0x68] sm:$0xff] %v703
    %729 = vst [vmem:[#allocation10 + $0x70] sm:$0xff] %v704
    %730 = vst [vmem:[#allocation10 + $0x78] sm:$0xff] %v705
    %731 = vst [vmem:[#allocation10 + $0x80] sm:$0xff] %v706
    %732 = vst [vmem:[#allocation10 + $0x88] sm:$0xff] %v707
    %733 = vst [vmem:[#allocation10 + $0x90] sm:$0xff] %v708
    %734 = vst [vmem:[#allocation10 + $0x98] sm:$0xff] %v709
    %735 = vst [vmem:[#allocation10 + $0xa0] sm:$0xff] %v710
    %736 = vst [vmem:[#allocation10 + $0xa8] sm:$0xff] %v711
    %737 = vst [vmem:[#allocation10 + $0xb0] sm:$0xff] %v712
    %738 = vst [vmem:[#allocation10 + $0xb8] sm:$0xff] %v713
    %739 = vst [vmem:[#allocation10 + $0xc0] sm:$0xff] %v714
    // Predicated region
    $region46: #{tpu_custom_call.1} parent=1 // pred_check
      _
    $region47: #{tpu_custom_call.1} parent=1 // pred_check_branch
      %741 = sbr.rel (0) target = $region49
    $region48: #{tpu_custom_call.1} parent=1 // pred_region
      %743 = vsyncadd [#allocation4], 0
      %s744 = sshll.u32 [#allocation10], 4
      %s745 = int_to_ptr.vmem [resolvable:$true] %s744
      %s746 = sshll.u32 %s7, 4
      %s747 = int_to_ptr.hbm [resolvable:$true] %s746
      %752 = dma.vmem_to_hbm [thread:$0]  %s745, 3200, %s747, [#allocation4], 128, 128, 8
    $region49: #{tpu_custom_call.1} parent=1 // pred_fallthru
      _
    // Predicated region
    $region50: #{tpu_custom_call.1} parent=1 // pred_check
      _
    $region51: #{tpu_custom_call.1} parent=1 // pred_check_branch
      %754 = sbr.rel (0) target = $region53
    $region52: #{tpu_custom_call.1} parent=1 // pred_region
      %756 = dma.done [#allocation4], 3200
    $region53: #{tpu_custom_call.1} parent=1 // pred_fallthru
      _
    %757 = vsyncpa [#allocation3], 1
    %758 = vsyncpa [#allocation6], 1
    %759 = vsyncpa [#allocation9], 1
    %760 = vsyncpa [#allocation4], 1

</llo_original>
